<compile_context>
chip_gen: v5e
topology: v5e:2x2
jax: 0.10.0
libtpu: 0.0.40
codegen_flags: <defaults>
</compile_context>

<pallas_src>
import functools
import math

import jax
import jax.numpy as jnp
from jax import lax
from jax.experimental import pallas as pl
from jax.experimental.pallas import tpu as pltpu  # noqa: F401  (TPU backend)

EPS = 1e-5   # TODO(synk): PyG BatchNorm(input_, output_) may pass output_ as eps in EdgeGLAM; using 1e-5 for both.
K_HOPS = 3   # TAGConv default K

# Set to jnp.bfloat16 on v6e/v7x for ~2x MXU throughput and half the weight /
# A_hat VMEM+HBM traffic; kept f32 here for exact parity with the torch ref.
MATMUL_DTYPE = jnp.float32


# --------------------------- in-kernel helpers --------------------------------

def _full_spec(shape):
    # Whole array as a single block (no grid) -> block dims equal array dims.
    return pl.BlockSpec(shape, lambda: (0,) * len(shape))


def _mm(a, b):
    return jnp.dot(a.astype(MATMUL_DTYPE), b.astype(MATMUL_DTYPE),
                   preferred_element_type=jnp.float32)


def _gelu(x):
    # torch.nn.GELU() default: exact erf formulation.
    return 0.5 * x * (1.0 + lax.erf(x * (1.0 / math.sqrt(2.0))))


def _sigmoid(x):
    # Exact sigmoid via tanh: runs on the EUP slot instead of exp + divide.
    return 0.5 * (jnp.tanh(0.5 * x) + 1.0)


def _softmax(x):
    m = jnp.max(x, axis=-1, keepdims=True)
    e = jnp.exp(x - m)
    return e * pl.reciprocal(jnp.sum(e, axis=-1, keepdims=True), approx=True)


def _bn(x, gamma, beta):
    # Training-mode batch norm over the node/row axis (biased variance).
    mean = jnp.mean(x, axis=0, keepdims=True)
    var = jnp.mean((x - mean) ** 2, axis=0, keepdims=True)
    return (x - mean) * lax.rsqrt(var + EPS) * gamma + beta


def _tag_hops(a_hat, x0, w_flat):
    # TAGConv: sum_k (A_hat^k x) @ W_k == concat_k(A_hat^k x) @ vstack_k(W_k)
    # -> one MXU matmul with a (K+1)*fi contraction instead of K+1 tiny ones.
    hops = [x0]
    xk = x0
    for _ in range(K_HOPS):
        xk = _mm(a_hat, xk)
        hops.append(xk)
    return _mm(jnp.concatenate(hops, axis=1), w_flat)


# --------------------------- the single fused kernel ---------------------------

def _fused_glam_kernel(
    # graph data
    a_ref, x_ref, y_ref, i0_ref, i1_ref,
    # NodeGLAM params (packed)
    nbn_g, nbn_b,
    l1_w, l1_b, t1_w, t1_b, l2_w, l2_b, t2_w, t2_b,
    l5_w, l5_b, l6_w, l6_b,
    hd1_w, hd1_b, hd2_w, hd2_b, hd3_w, hd3_b,
    # EdgeGLAM params (packed)
    ebn_g, ebn_b, el1_w, el1_b, el2_w, el2_b,
    # outputs
    cls_ref, cen_ref, epred_ref,
    *, n_classes,
):
    a_hat = a_ref[...]
    x = x_ref[...]

    # ---------------- NodeGLAM (all intermediates stay in VMEM) ----------------
    xn = _bn(x, nbn_g[...], nbn_b[...])
    h = _gelu(_mm(xn, l1_w[...]) + l1_b[...])
    h = _gelu(_tag_hops(a_hat, h, t1_w[...]) + t1_b[...])
    h = _gelu(_mm(h, l2_w[...]) + l2_b[...])
    h = _gelu(_tag_hops(a_hat, h, t2_w[...]) + t2_b[...])

    a_cat = jnp.concatenate([xn, h], axis=1)              # in-kernel concat
    a5 = _gelu(_mm(a_cat, l5_w[...]) + l5_b[...])
    emb = _mm(a5, l6_w[...]) + l6_b[...]                   # node embedding `a`

    # Fused classifier / center heads: [cls|cen] concatenated at level 1,
    # block-diagonal at levels 2 and 3 -> one matmul per level, GELU once.
    z = _mm(_gelu(emb), hd1_w[...]) + hd1_b[...]
    z = _mm(_gelu(z), hd2_w[...]) + hd2_b[...]
    z = _mm(_gelu(z), hd3_w[...]) + hd3_b[...]
    cls_ref[...] = _softmax(z[:, :n_classes])
    cen_ref[...] = _sigmoid(z[:, n_classes:n_classes + 1])

    # ---------------- EdgeGLAM (gather + concat + MLP, fused) ------------------
    n = x.shape[0]
    p = y_ref.shape[0]
    cols = lax.broadcasted_iota(jnp.int32, (p, n), 1)
    sel0 = (cols == i0_ref[...]).astype(jnp.float32)       # one-hot row gather
    sel1 = (cols == i1_ref[...]).astype(jnp.float32)       # done on the MXU
    omega = jnp.concatenate(
        [_mm(sel0, emb), _mm(sel1, emb), _mm(sel0, x), _mm(sel1, x), y_ref[...]],
        axis=1)
    on = _bn(omega, ebn_g[...], ebn_b[...])
    he = _gelu(_mm(on, el1_w[...]) + el1_b[...])
    epred_ref[...] = _sigmoid(_mm(he, el2_w[...]) + el2_b[...])


_PACKED_ORDER = (
    "nbn_g", "nbn_b",
    "l1_w", "l1_b", "t1_w", "t1_b", "l2_w", "l2_b", "t2_w", "t2_b",
    "l5_w", "l5_b", "l6_w", "l6_b",
    "hd1_w", "hd1_b", "hd2_w", "hd2_b", "hd3_w", "hd3_b",
    "ebn_g", "ebn_b", "el1_w", "el1_b", "el2_w", "el2_b",
)


def fused_glam(packed, x, a_hat, y, i0, i1, n_classes):
    n = x.shape[0]
    p = y.shape[0]
    data = [
        a_hat.astype(jnp.float32),
        x.astype(jnp.float32),
        y.astype(jnp.float32),
        i0.reshape(p, 1).astype(jnp.int32),
        i1.reshape(p, 1).astype(jnp.int32),
    ]
    args = data + [packed[k] for k in _PACKED_ORDER]
    out_shape = (
        jax.ShapeDtypeStruct((n, n_classes), jnp.float32),   # class probs
        jax.ShapeDtypeStruct((n, 1), jnp.float32),            # center indicator
        jax.ShapeDtypeStruct((p, 1), jnp.float32),            # edge prediction
    )
    return pl.pallas_call(
        functools.partial(_fused_glam_kernel, n_classes=n_classes),
        out_shape=out_shape,
        in_specs=[_full_spec(a.shape) for a in args],
        out_specs=tuple(_full_spec(s.shape) for s in out_shape),
        # TODO(synk): on v7x / large graphs add a node-row grid with
        # dimension_semantics=("parallel",) and raise vmem_limit_bytes as needed.
    )(*args)


# --------------------------- parameter init (deterministic) --------------------

def _init_linear(key, fi, fo, scale=0.1):
    kw, kb = jax.random.split(key)
    w = jax.random.normal(kw, (fi, fo), jnp.float32) * scale
    b = jax.random.normal(kb, (fo,), jnp.float32) * scale
    return w, b


def _init_tag(key, fi, fo, scale=0.1):
    kw, kb = jax.random.split(key)
    w = jax.random.normal(kw, (K_HOPS + 1, fi, fo), jnp.float32) * scale
    b = jax.random.normal(kb, (fo,), jnp.float32) * scale
    return w, b


def init_params(key, node_featch, h1, h2, edge_featch, n_classes=5):
    keys = jax.random.split(key, 16)
    edge_in = 2 * node_featch + 2 * h1[-1] + edge_featch
    p = {
        # NodeGLAM
        "n_bn_gamma": jnp.ones((node_featch,), jnp.float32),
        "n_bn_beta": jnp.zeros((node_featch,), jnp.float32),
        "lin1": _init_linear(keys[0], node_featch, h1[0]),
        "tag1": _init_tag(keys[1], h1[0], h1[1]),
        "lin2": _init_linear(keys[2], h1[1], h1[2]),
        "tag2": _init_tag(keys[3], h1[2], h1[3]),
        "lin5": _init_linear(keys[4], h1[3] + node_featch, h1[4]),
        "lin6": _init_linear(keys[5], h1[4], h1[5]),
        "cls1": _init_linear(keys[6], h1[5], h1[5]),
        "cls2": _init_linear(keys[7], h1[5], h1[5]),
        "cls3": _init_linear(keys[8], h1[5], n_classes),
        "cen1": _init_linear(keys[9], h1[5], h1[5]),
        "cen2": _init_linear(keys[10], h1[5], h1[5]),
        "cen3": _init_linear(keys[11], h1[5], 1),
        # EdgeGLAM
        "e_bn_gamma": jnp.ones((edge_in,), jnp.float32),
        "e_bn_beta": jnp.zeros((edge_in,), jnp.float32),
        "e_lin1": _init_linear(keys[12], edge_in, h2[0]),
        "e_lin2": _init_linear(keys[13], h2[0], 1),
    }
    return p


def pack_params(p):
    """Pack torch-style params into the fused-kernel layout (plain-JAX glue)."""
    def b2(b):
        return b.reshape(1, -1)

    def tag_flat(w):            # (K+1, fi, fo) -> ((K+1)*fi, fo), hop-major rows
        k1, fi, fo = w.shape
        return w.reshape(k1 * fi, fo)

    wc1, bc1 = p["cls1"]; wn1, bn1 = p["cen1"]
    wc2, bc2 = p["cls2"]; wn2, bn2 = p["cen2"]
    wc3, bc3 = p["cls3"]; wn3, bn3 = p["cen3"]
    h5 = wc1.shape[0]
    nc = wc3.shape[1]

    hd1_w = jnp.concatenate([wc1, wn1], axis=1)                 # shared input a
    hd1_b = jnp.concatenate([bc1, bn1])
    hd2_w = jnp.zeros((2 * h5, 2 * h5), jnp.float32)
    hd2_w = hd2_w.at[:h5, :h5].set(wc2).at[h5:, h5:].set(wn2)   # block diagonal
    hd2_b = jnp.concatenate([bc2, bn2])
    hd3_w = jnp.zeros((2 * h5, nc + 1), jnp.float32)
    hd3_w = hd3_w.at[:h5, :nc].set(wc3).at[h5:, nc:].set(wn3)   # block diagonal
    hd3_b = jnp.concatenate([bc3, bn3])

    return {
        "nbn_g": b2(p["n_bn_gamma"]), "nbn_b": b2(p["n_bn_beta"]),
        "l1_w": p["lin1"][0], "l1_b": b2(p["lin1"][1]),
        "t1_w": tag_flat(p["tag1"][0]), "t1_b": b2(p["tag1"][1]),
        "l2_w": p["lin2"][0], "l2_b": b2(p["lin2"][1]),
        "t2_w": tag_flat(p["tag2"][0]), "t2_b": b2(p["tag2"][1]),
        "l5_w": p["lin5"][0], "l5_b": b2(p["lin5"][1]),
        "l6_w": p["lin6"][0], "l6_b": b2(p["lin6"][1]),
        "hd1_w": hd1_w, "hd1_b": b2(hd1_b),
        "hd2_w": hd2_w, "hd2_b": b2(hd2_b),
        "hd3_w": hd3_w, "hd3_b": b2(hd3_b),
        "ebn_g": b2(p["e_bn_gamma"]), "ebn_b": b2(p["e_bn_beta"]),
        "el1_w": p["e_lin1"][0], "el1_b": b2(p["e_lin1"][1]),
        "el2_w": p["e_lin2"][0], "el2_b": b2(p["e_lin2"][1]),
    }


# --------------------------- model glue ----------------------------------------

def normalized_adjacency(edge_index, num_nodes):
    # Dense D^-1/2 A D^-1/2 (no self loops), built in plain JAX (glue).
    # TODO(synk): PyG TAGConv's gcn_norm coalesces/symmetrizes edge_index; this
    # port keeps the previous behaviour (raw directed edges, in-degree norm).
    src, dst = edge_index[0], edge_index[1]
    a = jnp.zeros((num_nodes, num_nodes), jnp.float32)
    a = a.at[dst, src].add(1.0)
    deg = jnp.sum(a, axis=1)
    dinv = jnp.where(deg > 0, 1.0 / jnp.sqrt(jnp.maximum(deg, 1e-12)), 0.0)
    return a * dinv[:, None] * dinv[None, :]


def torch_model_forward(p, X, Y, sp_A, i):
    num_nodes = X.shape[0]
    a_hat = normalized_adjacency(sp_A, num_nodes)
    packed = pack_params(p)
    n_classes = p["cls3"][0].shape[1]
    node_class, center_ind, e_pred = fused_glam(
        packed, X, a_hat, Y, i[0], i[1], n_classes)
    return node_class, jnp.squeeze(e_pred, 1), jnp.squeeze(center_ind, 1)


# --------------------------- main -----------------------------------------------

if __name__ == "__main__":
    NODE_FEATCH = 8
    H1 = [16, 16, 16, 16, 16, 16]
    H2 = [32]
    EDGE_FEATCH = 4
    N_NODES = 16
    N_ADJ_EDGES = 32
    N_PAIRS = 12

    key = jax.random.PRNGKey(0)
    kx, ky, ke, ki0, ki1, kp = jax.random.split(key, 6)

    X = jax.random.normal(kx, (N_NODES, NODE_FEATCH), jnp.float32)
    Y = jax.random.normal(ky, (N_PAIRS, EDGE_FEATCH), jnp.float32)
    sp_A = jax.random.randint(ke, (2, N_ADJ_EDGES), 0, N_NODES, jnp.int32)
    i0 = jax.random.randint(ki0, (N_PAIRS,), 0, N_NODES, jnp.int32)
    i1 = jax.random.randint(ki1, (N_PAIRS,), 0, N_NODES, jnp.int32)

    params = init_params(kp, NODE_FEATCH, H1, H2, EDGE_FEATCH, n_classes=5)

    forward = jax.jit(torch_model_forward)
    node_class, e_pred, center_ind = forward(params, X, Y, sp_A, (i0, i1))
    jax.block_until_ready((node_class, e_pred, center_ind))

    assert node_class.shape == (N_NODES, 5)
    assert e_pred.shape == (N_PAIRS,)
    assert center_ind.shape == (N_NODES,)
    assert bool(jnp.all(jnp.isfinite(node_class)))
    assert bool(jnp.all(jnp.isfinite(e_pred)))
    assert bool(jnp.all(jnp.isfinite(center_ind)))

    print("KERNEL_OK")
</pallas_src>

<mosaic_0001>
module attributes {stable_mosaic.version = 11 : i64} {
  func.func @_fused_glam_kernel(%arg0: memref<16x16xf32, #tpu.memory_space<vmem>>, %arg1: memref<16x8xf32, #tpu.memory_space<vmem>>, %arg2: memref<12x4xf32, #tpu.memory_space<vmem>>, %arg3: memref<12x1xi32, #tpu.memory_space<vmem>>, %arg4: memref<12x1xi32, #tpu.memory_space<vmem>>, %arg5: memref<1x8xf32, #tpu.memory_space<vmem>>, %arg6: memref<1x8xf32, #tpu.memory_space<vmem>>, %arg7: memref<8x16xf32, #tpu.memory_space<vmem>>, %arg8: memref<1x16xf32, #tpu.memory_space<vmem>>, %arg9: memref<64x16xf32, #tpu.memory_space<vmem>>, %arg10: memref<1x16xf32, #tpu.memory_space<vmem>>, %arg11: memref<16x16xf32, #tpu.memory_space<vmem>>, %arg12: memref<1x16xf32, #tpu.memory_space<vmem>>, %arg13: memref<64x16xf32, #tpu.memory_space<vmem>>, %arg14: memref<1x16xf32, #tpu.memory_space<vmem>>, %arg15: memref<24x16xf32, #tpu.memory_space<vmem>>, %arg16: memref<1x16xf32, #tpu.memory_space<vmem>>, %arg17: memref<16x16xf32, #tpu.memory_space<vmem>>, %arg18: memref<1x16xf32, #tpu.memory_space<vmem>>, %arg19: memref<16x32xf32, #tpu.memory_space<vmem>>, %arg20: memref<1x32xf32, #tpu.memory_space<vmem>>, %arg21: memref<32x32xf32, #tpu.memory_space<vmem>>, %arg22: memref<1x32xf32, #tpu.memory_space<vmem>>, %arg23: memref<32x6xf32, #tpu.memory_space<vmem>>, %arg24: memref<1x6xf32, #tpu.memory_space<vmem>>, %arg25: memref<1x52xf32, #tpu.memory_space<vmem>>, %arg26: memref<1x52xf32, #tpu.memory_space<vmem>>, %arg27: memref<52x32xf32, #tpu.memory_space<vmem>>, %arg28: memref<1x32xf32, #tpu.memory_space<vmem>>, %arg29: memref<32x1xf32, #tpu.memory_space<vmem>>, %arg30: memref<1x1xf32, #tpu.memory_space<vmem>>, %arg31: memref<16x5xf32, #tpu.memory_space<vmem>>, %arg32: memref<16x1xf32, #tpu.memory_space<vmem>>, %arg33: memref<12x1xf32, #tpu.memory_space<vmem>>) attributes {dimension_semantics = [], scalar_prefetch = 0 : i64, scratch_operands = 0 : i64, tpu.core_type = #tpu.core_type<tc>} {
    %c0 = arith.constant 0 : index
    %c0_0 = arith.constant 0 : index
    %0 = vector.load %arg0[%c0, %c0_0] : memref<16x16xf32, #tpu.memory_space<vmem>>, vector<16x16xf32>
    %c0_1 = arith.constant 0 : index
    %c0_2 = arith.constant 0 : index
    %1 = vector.load %arg1[%c0_1, %c0_2] : memref<16x8xf32, #tpu.memory_space<vmem>>, vector<16x8xf32>
    %c0_3 = arith.constant 0 : index
    %c0_4 = arith.constant 0 : index
    %2 = vector.load %arg5[%c0_3, %c0_4] : memref<1x8xf32, #tpu.memory_space<vmem>>, vector<1x8xf32>
    %c0_5 = arith.constant 0 : index
    %c0_6 = arith.constant 0 : index
    %3 = vector.load %arg6[%c0_5, %c0_6] : memref<1x8xf32, #tpu.memory_space<vmem>>, vector<1x8xf32>
    %cst = arith.constant dense<0.000000e+00> : vector<8xf32>
    %4 = vector.multi_reduction <add>, %1, %cst [0] : vector<16x8xf32> to vector<8xf32>
    %5 = vector.shape_cast %4 : vector<8xf32> to vector<1x8xf32>
    %cst_7 = arith.constant 1.600000e+01 : f32
    %6 = vector.broadcast %cst_7 : f32 to vector<1x8xf32>
    %7 = arith.divf %5, %6 : vector<1x8xf32>
    %8 = vector.broadcast %7 : vector<1x8xf32> to vector<16x8xf32>
    %9 = arith.subf %1, %8 : vector<16x8xf32>
    %10 = arith.mulf %9, %9 : vector<16x8xf32>
    %cst_8 = arith.constant dense<0.000000e+00> : vector<8xf32>
    %11 = vector.multi_reduction <add>, %10, %cst_8 [0] : vector<16x8xf32> to vector<8xf32>
    %12 = vector.shape_cast %11 : vector<8xf32> to vector<1x8xf32>
    %cst_9 = arith.constant 1.600000e+01 : f32
    %13 = vector.broadcast %cst_9 : f32 to vector<1x8xf32>
    %14 = arith.divf %12, %13 : vector<1x8xf32>
    %15 = vector.broadcast %7 : vector<1x8xf32> to vector<16x8xf32>
    %16 = arith.subf %1, %15 : vector<16x8xf32>
    %cst_10 = arith.constant 9.99999974E-6 : f32
    %17 = vector.broadcast %cst_10 : f32 to vector<1x8xf32>
    %18 = arith.addf %14, %17 : vector<1x8xf32>
    %19 = math.rsqrt %18 : vector<1x8xf32>
    %20 = vector.broadcast %19 : vector<1x8xf32> to vector<16x8xf32>
    %21 = arith.mulf %16, %20 : vector<16x8xf32>
    %22 = vector.broadcast %2 : vector<1x8xf32> to vector<16x8xf32>
    %23 = arith.mulf %21, %22 : vector<16x8xf32>
    %24 = vector.broadcast %3 : vector<1x8xf32> to vector<16x8xf32>
    %25 = arith.addf %23, %24 : vector<16x8xf32>
    %c0_11 = arith.constant 0 : index
    %c0_12 = arith.constant 0 : index
    %26 = vector.load %arg7[%c0_11, %c0_12] : memref<8x16xf32, #tpu.memory_space<vmem>>, vector<8x16xf32>
    %cst_13 = arith.constant dense<0.000000e+00> : vector<16x16xf32>
    %27 = tpu.matmul %25, %26, %cst_13 {dimension_numbers = #tpu.dot_dimension_numbers<[1], [0], [0], [1], [0, 0, 1, 1], [], []>} : vector<16x8xf32>, vector<8x16xf32>, vector<16x16xf32> -> vector<16x16xf32>
    %c0_14 = arith.constant 0 : index
    %c0_15 = arith.constant 0 : index
    %28 = vector.load %arg8[%c0_14, %c0_15] : memref<1x16xf32, #tpu.memory_space<vmem>>, vector<1x16xf32>
    %29 = vector.broadcast %28 : vector<1x16xf32> to vector<16x16xf32>
    %30 = arith.addf %27, %29 : vector<16x16xf32>
    %cst_16 = arith.constant 5.000000e-01 : f32
    %31 = vector.broadcast %cst_16 : f32 to vector<16x16xf32>
    %32 = arith.mulf %31, %30 : vector<16x16xf32>
    %cst_17 = arith.constant 0.707106769 : f32
    %33 = vector.broadcast %cst_17 : f32 to vector<16x16xf32>
    %34 = arith.mulf %30, %33 : vector<16x16xf32>
    %35 = math.erf %34 : vector<16x16xf32>
    %cst_18 = arith.constant 1.000000e+00 : f32
    %36 = vector.broadcast %cst_18 : f32 to vector<16x16xf32>
    %37 = arith.addf %36, %35 : vector<16x16xf32>
    %38 = arith.mulf %32, %37 : vector<16x16xf32>
    %c0_19 = arith.constant 0 : index
    %c0_20 = arith.constant 0 : index
    %39 = vector.load %arg9[%c0_19, %c0_20] : memref<64x16xf32, #tpu.memory_space<vmem>>, vector<64x16xf32>
    %cst_21 = arith.constant dense<0.000000e+00> : vector<16x16xf32>
    %40 = tpu.matmul %0, %38, %cst_21 {dimension_numbers = #tpu.dot_dimension_numbers<[1], [0], [0], [1], [0, 0, 1, 1], [], []>} : vector<16x16xf32>, vector<16x16xf32>, vector<16x16xf32> -> vector<16x16xf32>
    %cst_22 = arith.constant dense<0.000000e+00> : vector<16x16xf32>
    %41 = tpu.matmul %0, %40, %cst_22 {dimension_numbers = #tpu.dot_dimension_numbers<[1], [0], [0], [1], [0, 0, 1, 1], [], []>} : vector<16x16xf32>, vector<16x16xf32>, vector<16x16xf32> -> vector<16x16xf32>
    %cst_23 = arith.constant dense<0.000000e+00> : vector<16x16xf32>
    %42 = tpu.matmul %0, %41, %cst_23 {dimension_numbers = #tpu.dot_dimension_numbers<[1], [0], [0], [1], [0, 0, 1, 1], [], []>} : vector<16x16xf32>, vector<16x16xf32>, vector<16x16xf32> -> vector<16x16xf32>
    %43 = tpu.concatenate %38, %40, %41, %42 in 1 : vector<16x16xf32>, vector<16x16xf32>, vector<16x16xf32>, vector<16x16xf32> -> vector<16x64xf32>
    %cst_24 = arith.constant dense<0.000000e+00> : vector<16x16xf32>
    %44 = tpu.matmul %43, %39, %cst_24 {dimension_numbers = #tpu.dot_dimension_numbers<[1], [0], [0], [1], [0, 0, 1, 1], [], []>} : vector<16x64xf32>, vector<64x16xf32>, vector<16x16xf32> -> vector<16x16xf32>
    %c0_25 = arith.constant 0 : index
    %c0_26 = arith.constant 0 : index
    %45 = vector.load %arg10[%c0_25, %c0_26] : memref<1x16xf32, #tpu.memory_space<vmem>>, vector<1x16xf32>
    %46 = vector.broadcast %45 : vector<1x16xf32> to vector<16x16xf32>
    %47 = arith.addf %44, %46 : vector<16x16xf32>
    %cst_27 = arith.constant 5.000000e-01 : f32
    %48 = vector.broadcast %cst_27 : f32 to vector<16x16xf32>
    %49 = arith.mulf %48, %47 : vector<16x16xf32>
    %cst_28 = arith.constant 0.707106769 : f32
    %50 = vector.broadcast %cst_28 : f32 to vector<16x16xf32>
    %51 = arith.mulf %47, %50 : vector<16x16xf32>
    %52 = math.erf %51 : vector<16x16xf32>
    %cst_29 = arith.constant 1.000000e+00 : f32
    %53 = vector.broadcast %cst_29 : f32 to vector<16x16xf32>
    %54 = arith.addf %53, %52 : vector<16x16xf32>
    %55 = arith.mulf %49, %54 : vector<16x16xf32>
    %c0_30 = arith.constant 0 : index
    %c0_31 = arith.constant 0 : index
    %56 = vector.load %arg11[%c0_30, %c0_31] : memref<16x16xf32, #tpu.memory_space<vmem>>, vector<16x16xf32>
    %cst_32 = arith.constant dense<0.000000e+00> : vector<16x16xf32>
    %57 = tpu.matmul %55, %56, %cst_32 {dimension_numbers = #tpu.dot_dimension_numbers<[1], [0], [0], [1], [0, 0, 1, 1], [], []>} : vector<16x16xf32>, vector<16x16xf32>, vector<16x16xf32> -> vector<16x16xf32>
    %c0_33 = arith.constant 0 : index
    %c0_34 = arith.constant 0 : index
    %58 = vector.load %arg12[%c0_33, %c0_34] : memref<1x16xf32, #tpu.memory_space<vmem>>, vector<1x16xf32>
    %59 = vector.broadcast %58 : vector<1x16xf32> to vector<16x16xf32>
    %60 = arith.addf %57, %59 : vector<16x16xf32>
    %cst_35 = arith.constant 5.000000e-01 : f32
    %61 = vector.broadcast %cst_35 : f32 to vector<16x16xf32>
    %62 = arith.mulf %61, %60 : vector<16x16xf32>
    %cst_36 = arith.constant 0.707106769 : f32
    %63 = vector.broadcast %cst_36 : f32 to vector<16x16xf32>
    %64 = arith.mulf %60, %63 : vector<16x16xf32>
    %65 = math.erf %64 : vector<16x16xf32>
    %cst_37 = arith.constant 1.000000e+00 : f32
    %66 = vector.broadcast %cst_37 : f32 to vector<16x16xf32>
    %67 = arith.addf %66, %65 : vector<16x16xf32>
    %68 = arith.mulf %62, %67 : vector<16x16xf32>
    %c0_38 = arith.constant 0 : index
    %c0_39 = arith.constant 0 : index
    %69 = vector.load %arg13[%c0_38, %c0_39] : memref<64x16xf32, #tpu.memory_space<vmem>>, vector<64x16xf32>
    %cst_40 = arith.constant dense<0.000000e+00> : vector<16x16xf32>
    %70 = tpu.matmul %0, %68, %cst_40 {dimension_numbers = #tpu.dot_dimension_numbers<[1], [0], [0], [1], [0, 0, 1, 1], [], []>} : vector<16x16xf32>, vector<16x16xf32>, vector<16x16xf32> -> vector<16x16xf32>
    %cst_41 = arith.constant dense<0.000000e+00> : vector<16x16xf32>
    %71 = tpu.matmul %0, %70, %cst_41 {dimension_numbers = #tpu.dot_dimension_numbers<[1], [0], [0], [1], [0, 0, 1, 1], [], []>} : vector<16x16xf32>, vector<16x16xf32>, vector<16x16xf32> -> vector<16x16xf32>
    %cst_42 = arith.constant dense<0.000000e+00> : vector<16x16xf32>
    %72 = tpu.matmul %0, %71, %cst_42 {dimension_numbers = #tpu.dot_dimension_numbers<[1], [0], [0], [1], [0, 0, 1, 1], [], []>} : vector<16x16xf32>, vector<16x16xf32>, vector<16x16xf32> -> vector<16x16xf32>
    %73 = tpu.concatenate %68, %70, %71, %72 in 1 : vector<16x16xf32>, vector<16x16xf32>, vector<16x16xf32>, vector<16x16xf32> -> vector<16x64xf32>
    %cst_43 = arith.constant dense<0.000000e+00> : vector<16x16xf32>
    %74 = tpu.matmul %73, %69, %cst_43 {dimension_numbers = #tpu.dot_dimension_numbers<[1], [0], [0], [1], [0, 0, 1, 1], [], []>} : vector<16x64xf32>, vector<64x16xf32>, vector<16x16xf32> -> vector<16x16xf32>
    %c0_44 = arith.constant 0 : index
    %c0_45 = arith.constant 0 : index
    %75 = vector.load %arg14[%c0_44, %c0_45] : memref<1x16xf32, #tpu.memory_space<vmem>>, vector<1x16xf32>
    %76 = vector.broadcast %75 : vector<1x16xf32> to vector<16x16xf32>
    %77 = arith.addf %74, %76 : vector<16x16xf32>
    %cst_46 = arith.constant 5.000000e-01 : f32
    %78 = vector.broadcast %cst_46 : f32 to vector<16x16xf32>
    %79 = arith.mulf %78, %77 : vector<16x16xf32>
    %cst_47 = arith.constant 0.707106769 : f32
    %80 = vector.broadcast %cst_47 : f32 to vector<16x16xf32>
    %81 = arith.mulf %77, %80 : vector<16x16xf32>
    %82 = math.erf %81 : vector<16x16xf32>
    %cst_48 = arith.constant 1.000000e+00 : f32
    %83 = vector.broadcast %cst_48 : f32 to vector<16x16xf32>
    %84 = arith.addf %83, %82 : vector<16x16xf32>
    %85 = arith.mulf %79, %84 : vector<16x16xf32>
    %86 = tpu.concatenate %25, %85 in 1 : vector<16x8xf32>, vector<16x16xf32> -> vector<16x24xf32>
    %c0_49 = arith.constant 0 : index
    %c0_50 = arith.constant 0 : index
    %87 = vector.load %arg15[%c0_49, %c0_50] : memref<24x16xf32, #tpu.memory_space<vmem>>, vector<24x16xf32>
    %cst_51 = arith.constant dense<0.000000e+00> : vector<16x16xf32>
    %88 = tpu.matmul %86, %87, %cst_51 {dimension_numbers = #tpu.dot_dimension_numbers<[1], [0], [0], [1], [0, 0, 1, 1], [], []>} : vector<16x24xf32>, vector<24x16xf32>, vector<16x16xf32> -> vector<16x16xf32>
    %c0_52 = arith.constant 0 : index
    %c0_53 = arith.constant 0 : index
    %89 = vector.load %arg16[%c0_52, %c0_53] : memref<1x16xf32, #tpu.memory_space<vmem>>, vector<1x16xf32>
    %90 = vector.broadcast %89 : vector<1x16xf32> to vector<16x16xf32>
    %91 = arith.addf %88, %90 : vector<16x16xf32>
    %cst_54 = arith.constant 5.000000e-01 : f32
    %92 = vector.broadcast %cst_54 : f32 to vector<16x16xf32>
    %93 = arith.mulf %92, %91 : vector<16x16xf32>
    %cst_55 = arith.constant 0.707106769 : f32
    %94 = vector.broadcast %cst_55 : f32 to vector<16x16xf32>
    %95 = arith.mulf %91, %94 : vector<16x16xf32>
    %96 = math.erf %95 : vector<16x16xf32>
    %cst_56 = arith.constant 1.000000e+00 : f32
    %97 = vector.broadcast %cst_56 : f32 to vector<16x16xf32>
    %98 = arith.addf %97, %96 : vector<16x16xf32>
    %99 = arith.mulf %93, %98 : vector<16x16xf32>
    %c0_57 = arith.constant 0 : index
    %c0_58 = arith.constant 0 : index
    %100 = vector.load %arg17[%c0_57, %c0_58] : memref<16x16xf32, #tpu.memory_space<vmem>>, vector<16x16xf32>
    %cst_59 = arith.constant dense<0.000000e+00> : vector<16x16xf32>
    %101 = tpu.matmul %99, %100, %cst_59 {dimension_numbers = #tpu.dot_dimension_numbers<[1], [0], [0], [1], [0, 0, 1, 1], [], []>} : vector<16x16xf32>, vector<16x16xf32>, vector<16x16xf32> -> vector<16x16xf32>
    %c0_60 = arith.constant 0 : index
    %c0_61 = arith.constant 0 : index
    %102 = vector.load %arg18[%c0_60, %c0_61] : memref<1x16xf32, #tpu.memory_space<vmem>>, vector<1x16xf32>
    %103 = vector.broadcast %102 : vector<1x16xf32> to vector<16x16xf32>
    %104 = arith.addf %101, %103 : vector<16x16xf32>
    %cst_62 = arith.constant 5.000000e-01 : f32
    %105 = vector.broadcast %cst_62 : f32 to vector<16x16xf32>
    %106 = arith.mulf %105, %104 : vector<16x16xf32>
    %cst_63 = arith.constant 0.707106769 : f32
    %107 = vector.broadcast %cst_63 : f32 to vector<16x16xf32>
    %108 = arith.mulf %104, %107 : vector<16x16xf32>
    %109 = math.erf %108 : vector<16x16xf32>
    %cst_64 = arith.constant 1.000000e+00 : f32
    %110 = vector.broadcast %cst_64 : f32 to vector<16x16xf32>
    %111 = arith.addf %110, %109 : vector<16x16xf32>
    %112 = arith.mulf %106, %111 : vector<16x16xf32>
    %c0_65 = arith.constant 0 : index
    %c0_66 = arith.constant 0 : index
    %113 = vector.load %arg19[%c0_65, %c0_66] : memref<16x32xf32, #tpu.memory_space<vmem>>, vector<16x32xf32>
    %cst_67 = arith.constant dense<0.000000e+00> : vector<16x32xf32>
    %114 = tpu.matmul %112, %113, %cst_67 {dimension_numbers = #tpu.dot_dimension_numbers<[1], [0], [0], [1], [0, 0, 1, 1], [], []>} : vector<16x16xf32>, vector<16x32xf32>, vector<16x32xf32> -> vector<16x32xf32>
    %c0_68 = arith.constant 0 : index
    %c0_69 = arith.constant 0 : index
    %115 = vector.load %arg20[%c0_68, %c0_69] : memref<1x32xf32, #tpu.memory_space<vmem>>, vector<1x32xf32>
    %116 = vector.broadcast %115 : vector<1x32xf32> to vector<16x32xf32>
    %117 = arith.addf %114, %116 : vector<16x32xf32>
    %cst_70 = arith.constant 5.000000e-01 : f32
    %118 = vector.broadcast %cst_70 : f32 to vector<16x32xf32>
    %119 = arith.mulf %118, %117 : vector<16x32xf32>
    %cst_71 = arith.constant 0.707106769 : f32
    %120 = vector.broadcast %cst_71 : f32 to vector<16x32xf32>
    %121 = arith.mulf %117, %120 : vector<16x32xf32>
    %122 = math.erf %121 : vector<16x32xf32>
    %cst_72 = arith.constant 1.000000e+00 : f32
    %123 = vector.broadcast %cst_72 : f32 to vector<16x32xf32>
    %124 = arith.addf %123, %122 : vector<16x32xf32>
    %125 = arith.mulf %119, %124 : vector<16x32xf32>
    %c0_73 = arith.constant 0 : index
    %c0_74 = arith.constant 0 : index
    %126 = vector.load %arg21[%c0_73, %c0_74] : memref<32x32xf32, #tpu.memory_space<vmem>>, vector<32x32xf32>
    %cst_75 = arith.constant dense<0.000000e+00> : vector<16x32xf32>
    %127 = tpu.matmul %125, %126, %cst_75 {dimension_numbers = #tpu.dot_dimension_numbers<[1], [0], [0], [1], [0, 0, 1, 1], [], []>} : vector<16x32xf32>, vector<32x32xf32>, vector<16x32xf32> -> vector<16x32xf32>
    %c0_76 = arith.constant 0 : index
    %c0_77 = arith.constant 0 : index
    %128 = vector.load %arg22[%c0_76, %c0_77] : memref<1x32xf32, #tpu.memory_space<vmem>>, vector<1x32xf32>
    %129 = vector.broadcast %128 : vector<1x32xf32> to vector<16x32xf32>
    %130 = arith.addf %127, %129 : vector<16x32xf32>
    %cst_78 = arith.constant 5.000000e-01 : f32
    %131 = vector.broadcast %cst_78 : f32 to vector<16x32xf32>
    %132 = arith.mulf %131, %130 : vector<16x32xf32>
    %cst_79 = arith.constant 0.707106769 : f32
    %133 = vector.broadcast %cst_79 : f32 to vector<16x32xf32>
    %134 = arith.mulf %130, %133 : vector<16x32xf32>
    %135 = math.erf %134 : vector<16x32xf32>
    %cst_80 = arith.constant 1.000000e+00 : f32
    %136 = vector.broadcast %cst_80 : f32 to vector<16x32xf32>
    %137 = arith.addf %136, %135 : vector<16x32xf32>
    %138 = arith.mulf %132, %137 : vector<16x32xf32>
    %c0_81 = arith.constant 0 : index
    %c0_82 = arith.constant 0 : index
    %139 = vector.load %arg23[%c0_81, %c0_82] : memref<32x6xf32, #tpu.memory_space<vmem>>, vector<32x6xf32>
    %cst_83 = arith.constant dense<0.000000e+00> : vector<16x6xf32>
    %140 = tpu.matmul %138, %139, %cst_83 {dimension_numbers = #tpu.dot_dimension_numbers<[1], [0], [0], [1], [0, 0, 1, 1], [], []>} : vector<16x32xf32>, vector<32x6xf32>, vector<16x6xf32> -> vector<16x6xf32>
    %c0_84 = arith.constant 0 : index
    %c0_85 = arith.constant 0 : index
    %141 = vector.load %arg24[%c0_84, %c0_85] : memref<1x6xf32, #tpu.memory_space<vmem>>, vector<1x6xf32>
    %142 = vector.broadcast %141 : vector<1x6xf32> to vector<16x6xf32>
    %143 = arith.addf %140, %142 : vector<16x6xf32>
    %144 = vector.extract_strided_slice %143 {offsets = [0, 0], sizes = [16, 5], strides = [1, 1]} : vector<16x6xf32> to vector<16x5xf32>
    %cst_86 = arith.constant dense<0xFF800000> : vector<16xf32>
    %145 = vector.multi_reduction <maximumf>, %144, %cst_86 [1] : vector<16x5xf32> to vector<16xf32>
    %146 = vector.shape_cast %145 : vector<16xf32> to vector<16x1xf32>
    %147 = vector.broadcast %146 : vector<16x1xf32> to vector<16x5xf32>
    %148 = arith.subf %144, %147 : vector<16x5xf32>
    %149 = math.exp %148 : vector<16x5xf32>
    %cst_87 = arith.constant dense<0.000000e+00> : vector<16xf32>
    %150 = vector.multi_reduction <add>, %149, %cst_87 [1] : vector<16x5xf32> to vector<16xf32>
    %151 = vector.shape_cast %150 : vector<16xf32> to vector<16x1xf32>
    %152 = tpu.reciprocal %151 {approx = true} : vector<16x1xf32> -> vector<16x1xf32>
    %153 = vector.broadcast %152 : vector<16x1xf32> to vector<16x5xf32>
    %154 = arith.mulf %149, %153 : vector<16x5xf32>
    %c0_88 = arith.constant 0 : index
    %c0_89 = arith.constant 0 : index
    %155 = vector.load %arg31[%c0_88, %c0_89] : memref<16x5xf32, #tpu.memory_space<vmem>>, vector<16x5xf32>
    tpu.vector_store %arg31[%c0_88, %c0_89], %154 {strides = array<i32>} : memref<16x5xf32, #tpu.memory_space<vmem>>, vector<16x5xf32>,
    %156 = vector.extract_strided_slice %143 {offsets = [0, 5], sizes = [16, 1], strides = [1, 1]} : vector<16x6xf32> to vector<16x1xf32>
    %cst_90 = arith.constant 5.000000e-01 : f32
    %157 = vector.broadcast %cst_90 : f32 to vector<16x1xf32>
    %158 = arith.mulf %157, %156 : vector<16x1xf32>
    %159 = math.tanh %158 : vector<16x1xf32>
    %cst_91 = arith.constant 1.000000e+00 : f32
    %160 = vector.broadcast %cst_91 : f32 to vector<16x1xf32>
    %161 = arith.addf %159, %160 : vector<16x1xf32>
    %cst_92 = arith.constant 5.000000e-01 : f32
    %162 = vector.broadcast %cst_92 : f32 to vector<16x1xf32>
    %163 = arith.mulf %162, %161 : vector<16x1xf32>
    %c0_93 = arith.constant 0 : index
    %c0_94 = arith.constant 0 : index
    %164 = vector.load %arg32[%c0_93, %c0_94] : memref<16x1xf32, #tpu.memory_space<vmem>>, vector<16x1xf32>
    tpu.vector_store %arg32[%c0_93, %c0_94], %163 {strides = array<i32>} : memref<16x1xf32, #tpu.memory_space<vmem>>, vector<16x1xf32>,
    %165 = tpu.iota {dimensions = array<i32: 1>} : vector<12x16xi32>
    %c0_95 = arith.constant 0 : index
    %c0_96 = arith.constant 0 : index
    %166 = vector.load %arg3[%c0_95, %c0_96] : memref<12x1xi32, #tpu.memory_space<vmem>>, vector<12x1xi32>
    %167 = vector.broadcast %166 : vector<12x1xi32> to vector<12x16xi32>
    %168 = arith.cmpi eq, %165, %167 : vector<12x16xi32>
    %169 = arith.extui %168 : vector<12x16xi1> to vector<12x16xi32>
    %170 = arith.sitofp %169 : vector<12x16xi32> to vector<12x16xf32>
    %c0_97 = arith.constant 0 : index
    %c0_98 = arith.constant 0 : index
    %171 = vector.load %arg4[%c0_97, %c0_98] : memref<12x1xi32, #tpu.memory_space<vmem>>, vector<12x1xi32>
    %172 = vector.broadcast %171 : vector<12x1xi32> to vector<12x16xi32>
    %173 = arith.cmpi eq, %165, %172 : vector<12x16xi32>
    %174 = arith.extui %173 : vector<12x16xi1> to vector<12x16xi32>
    %175 = arith.sitofp %174 : vector<12x16xi32> to vector<12x16xf32>
    %cst_99 = arith.constant dense<0.000000e+00> : vector<12x16xf32>
    %176 = tpu.matmul %170, %104, %cst_99 {dimension_numbers = #tpu.dot_dimension_numbers<[1], [0], [0], [1], [0, 0, 1, 1], [], []>} : vector<12x16xf32>, vector<16x16xf32>, vector<12x16xf32> -> vector<12x16xf32>
    %cst_100 = arith.constant dense<0.000000e+00> : vector<12x16xf32>
    %177 = tpu.matmul %175, %104, %cst_100 {dimension_numbers = #tpu.dot_dimension_numbers<[1], [0], [0], [1], [0, 0, 1, 1], [], []>} : vector<12x16xf32>, vector<16x16xf32>, vector<12x16xf32> -> vector<12x16xf32>
    %cst_101 = arith.constant dense<0.000000e+00> : vector<12x8xf32>
    %178 = tpu.matmul %170, %1, %cst_101 {dimension_numbers = #tpu.dot_dimension_numbers<[1], [0], [0], [1], [0, 0, 1, 1], [], []>} : vector<12x16xf32>, vector<16x8xf32>, vector<12x8xf32> -> vector<12x8xf32>
    %cst_102 = arith.constant dense<0.000000e+00> : vector<12x8xf32>
    %179 = tpu.matmul %175, %1, %cst_102 {dimension_numbers = #tpu.dot_dimension_numbers<[1], [0], [0], [1], [0, 0, 1, 1], [], []>} : vector<12x16xf32>, vector<16x8xf32>, vector<12x8xf32> -> vector<12x8xf32>
    %c0_103 = arith.constant 0 : index
    %c0_104 = arith.constant 0 : index
    %180 = vector.load %arg2[%c0_103, %c0_104] : memref<12x4xf32, #tpu.memory_space<vmem>>, vector<12x4xf32>
    %181 = tpu.concatenate %176, %177, %178, %179, %180 in 1 : vector<12x16xf32>, vector<12x16xf32>, vector<12x8xf32>, vector<12x8xf32>, vector<12x4xf32> -> vector<12x52xf32>
    %c0_105 = arith.constant 0 : index
    %c0_106 = arith.constant 0 : index
    %182 = vector.load %arg25[%c0_105, %c0_106] : memref<1x52xf32, #tpu.memory_space<vmem>>, vector<1x52xf32>
    %c0_107 = arith.constant 0 : index
    %c0_108 = arith.constant 0 : index
    %183 = vector.load %arg26[%c0_107, %c0_108] : memref<1x52xf32, #tpu.memory_space<vmem>>, vector<1x52xf32>
    %cst_109 = arith.constant dense<0.000000e+00> : vector<52xf32>
    %184 = vector.multi_reduction <add>, %181, %cst_109 [0] : vector<12x52xf32> to vector<52xf32>
    %185 = vector.shape_cast %184 : vector<52xf32> to vector<1x52xf32>
    %cst_110 = arith.constant 1.200000e+01 : f32
    %186 = vector.broadcast %cst_110 : f32 to vector<1x52xf32>
    %187 = arith.divf %185, %186 : vector<1x52xf32>
    %188 = vector.broadcast %187 : vector<1x52xf32> to vector<12x52xf32>
    %189 = arith.subf %181, %188 : vector<12x52xf32>
    %190 = arith.mulf %189, %189 : vector<12x52xf32>
    %cst_111 = arith.constant dense<0.000000e+00> : vector<52xf32>
    %191 = vector.multi_reduction <add>, %190, %cst_111 [0] : vector<12x52xf32> to vector<52xf32>
    %192 = vector.shape_cast %191 : vector<52xf32> to vector<1x52xf32>
    %cst_112 = arith.constant 1.200000e+01 : f32
    %193 = vector.broadcast %cst_112 : f32 to vector<1x52xf32>
    %194 = arith.divf %192, %193 : vector<1x52xf32>
    %195 = vector.broadcast %187 : vector<1x52xf32> to vector<12x52xf32>
    %196 = arith.subf %181, %195 : vector<12x52xf32>
    %cst_113 = arith.constant 9.99999974E-6 : f32
    %197 = vector.broadcast %cst_113 : f32 to vector<1x52xf32>
    %198 = arith.addf %194, %197 : vector<1x52xf32>
    %199 = math.rsqrt %198 : vector<1x52xf32>
    %200 = vector.broadcast %199 : vector<1x52xf32> to vector<12x52xf32>
    %201 = arith.mulf %196, %200 : vector<12x52xf32>
    %202 = vector.broadcast %182 : vector<1x52xf32> to vector<12x52xf32>
    %203 = arith.mulf %201, %202 : vector<12x52xf32>
    %204 = vector.broadcast %183 : vector<1x52xf32> to vector<12x52xf32>
    %205 = arith.addf %203, %204 : vector<12x52xf32>
    %c0_114 = arith.constant 0 : index
    %c0_115 = arith.constant 0 : index
    %206 = vector.load %arg27[%c0_114, %c0_115] : memref<52x32xf32, #tpu.memory_space<vmem>>, vector<52x32xf32>
    %cst_116 = arith.constant dense<0.000000e+00> : vector<12x32xf32>
    %207 = tpu.matmul %205, %206, %cst_116 {dimension_numbers = #tpu.dot_dimension_numbers<[1], [0], [0], [1], [0, 0, 1, 1], [], []>} : vector<12x52xf32>, vector<52x32xf32>, vector<12x32xf32> -> vector<12x32xf32>
    %c0_117 = arith.constant 0 : index
    %c0_118 = arith.constant 0 : index
    %208 = vector.load %arg28[%c0_117, %c0_118] : memref<1x32xf32, #tpu.memory_space<vmem>>, vector<1x32xf32>
    %209 = vector.broadcast %208 : vector<1x32xf32> to vector<12x32xf32>
    %210 = arith.addf %207, %209 : vector<12x32xf32>
    %cst_119 = arith.constant 5.000000e-01 : f32
    %211 = vector.broadcast %cst_119 : f32 to vector<12x32xf32>
    %212 = arith.mulf %211, %210 : vector<12x32xf32>
    %cst_120 = arith.constant 0.707106769 : f32
    %213 = vector.broadcast %cst_120 : f32 to vector<12x32xf32>
    %214 = arith.mulf %210, %213 : vector<12x32xf32>
    %215 = math.erf %214 : vector<12x32xf32>
    %cst_121 = arith.constant 1.000000e+00 : f32
    %216 = vector.broadcast %cst_121 : f32 to vector<12x32xf32>
    %217 = arith.addf %216, %215 : vector<12x32xf32>
    %218 = arith.mulf %212, %217 : vector<12x32xf32>
    %c0_122 = arith.constant 0 : index
    %c0_123 = arith.constant 0 : index
    %219 = vector.load %arg29[%c0_122, %c0_123] : memref<32x1xf32, #tpu.memory_space<vmem>>, vector<32x1xf32>
    %cst_124 = arith.constant dense<0.000000e+00> : vector<12x1xf32>
    %220 = tpu.matmul %218, %219, %cst_124 {dimension_numbers = #tpu.dot_dimension_numbers<[1], [0], [0], [1], [0, 0, 1, 1], [], []>} : vector<12x32xf32>, vector<32x1xf32>, vector<12x1xf32> -> vector<12x1xf32>
    %c0_125 = arith.constant 0 : index
    %c0_126 = arith.constant 0 : index
    %221 = vector.load %arg30[%c0_125, %c0_126] : memref<1x1xf32, #tpu.memory_space<vmem>>, vector<1x1xf32>
    %222 = vector.broadcast %221 : vector<1x1xf32> to vector<12x1xf32>
    %223 = arith.addf %220, %222 : vector<12x1xf32>
    %cst_127 = arith.constant 5.000000e-01 : f32
    %224 = vector.broadcast %cst_127 : f32 to vector<12x1xf32>
    %225 = arith.mulf %224, %223 : vector<12x1xf32>
    %226 = math.tanh %225 : vector<12x1xf32>
    %cst_128 = arith.constant 1.000000e+00 : f32
    %227 = vector.broadcast %cst_128 : f32 to vector<12x1xf32>
    %228 = arith.addf %226, %227 : vector<12x1xf32>
    %cst_129 = arith.constant 5.000000e-01 : f32
    %229 = vector.broadcast %cst_129 : f32 to vector<12x1xf32>
    %230 = arith.mulf %229, %228 : vector<12x1xf32>
    %c0_130 = arith.constant 0 : index
    %c0_131 = arith.constant 0 : index
    %231 = vector.load %arg33[%c0_130, %c0_131] : memref<12x1xf32, #tpu.memory_space<vmem>>, vector<12x1xf32>
    tpu.vector_store %arg33[%c0_130, %c0_131], %230 {strides = array<i32>} : memref<12x1xf32, #tpu.memory_space<vmem>>, vector<12x1xf32>,
    return
  }
}

</mosaic_0001>

<llo_original>
// kernel: torch_model_forward.1
$region0: #{torch_model_forward.1}
  #allocation0 [shape = 'u32[]', space=smem, size = 0x4, offset = 0x4, fixed_abs, tag = 'smem constant byte address 0x4 - core index']
  #allocation1 [shape = 'u32[72,128]{1,0:T(1,128)}', space=vmem, size = 0x9000, scoped, tag = 'internal scratch']
  #allocation2 [shape = 'f32[1,1]{1,0:T(1,128)S(1)}', space=vmem, size = 0x200, scoped, tag = 'scoped memory for torch_model_forward.1']
  %s0 = inlined_call_operand.smem [shape: u32[34], index: -1, kind: input, shape index: {}]
  %s1 = sld [smem:[%s0]]
  %s2 = scalar_lea.smem %s0, 1
  %s3 = sld [smem:[%s2]]
  %s4 = scalar_lea.smem %s0, 2
  %s5 = sld [smem:[%s4]]
  %s6 = scalar_lea.smem %s0, 3
  %s7 = sld [smem:[%s6]]
  %s8 = scalar_lea.smem %s0, 4
  %s9 = sld [smem:[%s8]]
  %s10 = scalar_lea.smem %s0, 5
  %s11 = sld [smem:[%s10]]
  %s12 = scalar_lea.smem %s0, 6
  %s13 = sld [smem:[%s12]]
  %s14 = scalar_lea.smem %s0, 7
  %s15 = sld [smem:[%s14]]
  %s16 = scalar_lea.smem %s0, 8
  %s17 = sld [smem:[%s16]]
  %s18 = scalar_lea.smem %s0, 9
  %s19 = sld [smem:[%s18]]
  %s20 = scalar_lea.smem %s0, 10
  %s21 = sld [smem:[%s20]]
  %s22 = scalar_lea.smem %s0, 11
  %s23 = sld [smem:[%s22]]
  %s24 = scalar_lea.smem %s0, 12
  %s25 = sld [smem:[%s24]]
  %s26 = scalar_lea.smem %s0, 13
  %s27 = sld [smem:[%s26]]
  %s28 = scalar_lea.smem %s0, 14
  %s29 = sld [smem:[%s28]]
  %s30 = scalar_lea.smem %s0, 15
  %s31 = sld [smem:[%s30]]
  %s32 = scalar_lea.smem %s0, 16
  %s33 = sld [smem:[%s32]]
  %s34 = scalar_lea.smem %s0, 17
  %s35 = sld [smem:[%s34]]
  %s36 = scalar_lea.smem %s0, 18
  %s37 = sld [smem:[%s36]]
  %s38 = scalar_lea.smem %s0, 19
  %s39 = sld [smem:[%s38]]
  %s40 = scalar_lea.smem %s0, 20
  %s41 = sld [smem:[%s40]]
  %s42 = scalar_lea.smem %s0, 21
  %s43 = sld [smem:[%s42]]
  %s44 = scalar_lea.smem %s0, 22
  %s45 = sld [smem:[%s44]]
  %s46 = scalar_lea.smem %s0, 23
  %s47 = sld [smem:[%s46]]
  %s48 = scalar_lea.smem %s0, 24
  %s49 = sld [smem:[%s48]]
  %s50 = scalar_lea.smem %s0, 25
  %s51 = sld [smem:[%s50]]
  %s52 = scalar_lea.smem %s0, 26
  %s53 = sld [smem:[%s52]]
  %s54 = scalar_lea.smem %s0, 27
  %s55 = sld [smem:[%s54]]
  %s56 = scalar_lea.smem %s0, 28
  %s57 = sld [smem:[%s56]]
  %s58 = scalar_lea.smem %s0, 29
  %s59 = sld [smem:[%s58]]
  %s60 = scalar_lea.smem %s0, 30
  %s61 = sld [smem:[%s60]]
  %s62 = scalar_lea.smem %s0, 31
  %s63 = sld [smem:[%s62]]
  %s64 = scalar_lea.smem %s0, 32
  %s65 = sld [smem:[%s64]]
  %s66 = scalar_lea.smem %s0, 33
  %s67 = sld [smem:[%s66]]
  %68 = xla_tuple %s63, %s65, %s67
  %s69 = sld [smem:[#allocation0]]
  $region150: #{torch_model_forward.1} parent=0
    _
  %s71 = ssub.s32 1, %s69
  %s72 = scalar_select 0, %s71, %s69
  %v73 = vstv %s61
  %74 = vst [vmem:[#allocation2] sm:$0x1] %v73
  // Predicated region
  $region2: #{torch_model_forward.1} parent=0 // pred_check
    _
  $region3: #{torch_model_forward.1} parent=0 // pred_check_branch
    %76 = sbr.rel (0) target = $region5
  $region4: #{torch_model_forward.1} parent=0 // pred_region
    _
  $region5: #{torch_model_forward.1} parent=0 // pred_fallthru
    _
  // Predicated region
  $region6: #{torch_model_forward.1} parent=0 // pred_check
    _
  $region7: #{torch_model_forward.1} parent=0 // pred_check_branch
    %78 = sbr.rel (0) target = $region9
  $region8: #{torch_model_forward.1} parent=0 // pred_region
    _
  $region9: #{torch_model_forward.1} parent=0 // pred_fallthru
    _
  // Predicated region
  $region10: #{torch_model_forward.1} parent=0 // pred_check
    _
  $region11: #{torch_model_forward.1} parent=0 // pred_check_branch
    %80 = sbr.rel (0) target = $region13
  $region12: #{torch_model_forward.1} parent=0 // pred_region
    _
  $region13: #{torch_model_forward.1} parent=0 // pred_fallthru
    _
  // Predicated region
  $region14: #{torch_model_forward.1} parent=0 // pred_check
    _
  $region15: #{torch_model_forward.1} parent=0 // pred_check_branch
    %82 = sbr.rel (0) target = $region17
  $region16: #{torch_model_forward.1} parent=0 // pred_region
    _
  $region17: #{torch_model_forward.1} parent=0 // pred_fallthru
    _
  // Predicated region
  $region18: #{torch_model_forward.1} parent=0 // pred_check
    _
  $region19: #{torch_model_forward.1} parent=0 // pred_check_branch
    %84 = sbr.rel (0) target = $region21
  $region20: #{torch_model_forward.1} parent=0 // pred_region
    _
  $region21: #{torch_model_forward.1} parent=0 // pred_fallthru
    _
  // Predicated region
  $region22: #{torch_model_forward.1} parent=0 // pred_check
    _
  $region23: #{torch_model_forward.1} parent=0 // pred_check_branch
    %86 = sbr.rel (0) target = $region25
  $region24: #{torch_model_forward.1} parent=0 // pred_region
    _
  $region25: #{torch_model_forward.1} parent=0 // pred_fallthru
    _
  // Predicated region
  $region26: #{torch_model_forward.1} parent=0 // pred_check
    _
  $region27: #{torch_model_forward.1} parent=0 // pred_check_branch
    %88 = sbr.rel (0) target = $region29
  $region28: #{torch_model_forward.1} parent=0 // pred_region
    _
  $region29: #{torch_model_forward.1} parent=0 // pred_fallthru
    _
  // Predicated region
  $region30: #{torch_model_forward.1} parent=0 // pred_check
    _
  $region31: #{torch_model_forward.1} parent=0 // pred_check_branch
    %90 = sbr.rel (0) target = $region33
  $region32: #{torch_model_forward.1} parent=0 // pred_region
    _
  $region33: #{torch_model_forward.1} parent=0 // pred_fallthru
    _
  // Predicated region
  $region34: #{torch_model_forward.1} parent=0 // pred_check
    _
  $region35: #{torch_model_forward.1} parent=0 // pred_check_branch
    %92 = sbr.rel (0) target = $region37
  $region36: #{torch_model_forward.1} parent=0 // pred_region
    _
  $region37: #{torch_model_forward.1} parent=0 // pred_fallthru
    _
  // Predicated region
  $region38: #{torch_model_forward.1} parent=0 // pred_check
    _
  $region39: #{torch_model_forward.1} parent=0 // pred_check_branch
    %94 = sbr.rel (0) target = $region41
  $region40: #{torch_model_forward.1} parent=0 // pred_region
    _
  $region41: #{torch_model_forward.1} parent=0 // pred_fallthru
    _
  // Predicated region
  $region42: #{torch_model_forward.1} parent=0 // pred_check
    _
  $region43: #{torch_model_forward.1} parent=0 // pred_check_branch
    %96 = sbr.rel (0) target = $region45
  $region44: #{torch_model_forward.1} parent=0 // pred_region
    _
  $region45: #{torch_model_forward.1} parent=0 // pred_fallthru
    _
  // Predicated region
  $region46: #{torch_model_forward.1} parent=0 // pred_check
    _
  $region47: #{torch_model_forward.1} parent=0 // pred_check_branch
    %98 = sbr.rel (0) target = $region49
  $region48: #{torch_model_forward.1} parent=0 // pred_region
    _
  $region49: #{torch_model_forward.1} parent=0 // pred_fallthru
    _
  // Predicated region
  $region50: #{torch_model_forward.1} parent=0 // pred_check
    _
  $region51: #{torch_model_forward.1} parent=0 // pred_check_branch
    %100 = sbr.rel (0) target = $region53
  $region52: #{torch_model_forward.1} parent=0 // pred_region
    _
  $region53: #{torch_model_forward.1} parent=0 // pred_fallthru
    _
  // Predicated region
  $region54: #{torch_model_forward.1} parent=0 // pred_check
    _
  $region55: #{torch_model_forward.1} parent=0 // pred_check_branch
    %102 = sbr.rel (0) target = $region57
  $region56: #{torch_model_forward.1} parent=0 // pred_region
    _
  $region57: #{torch_model_forward.1} parent=0 // pred_fallthru
    _
  // Predicated region
  $region58: #{torch_model_forward.1} parent=0 // pred_check
    _
  $region59: #{torch_model_forward.1} parent=0 // pred_check_branch
    %104 = sbr.rel (0) target = $region61
  $region60: #{torch_model_forward.1} parent=0 // pred_region
    _
  $region61: #{torch_model_forward.1} parent=0 // pred_fallthru
    _
  // Predicated region
  $region62: #{torch_model_forward.1} parent=0 // pred_check
    _
  $region63: #{torch_model_forward.1} parent=0 // pred_check_branch
    %106 = sbr.rel (0) target = $region65
  $region64: #{torch_model_forward.1} parent=0 // pred_region
    _
  $region65: #{torch_model_forward.1} parent=0 // pred_fallthru
    _
  // Predicated region
  $region66: #{torch_model_forward.1} parent=0 // pred_check
    _
  $region67: #{torch_model_forward.1} parent=0 // pred_check_branch
    %108 = sbr.rel (0) target = $region69
  $region68: #{torch_model_forward.1} parent=0 // pred_region
    _
  $region69: #{torch_model_forward.1} parent=0 // pred_fallthru
    _
  // Predicated region
  $region70: #{torch_model_forward.1} parent=0 // pred_check
    _
  $region71: #{torch_model_forward.1} parent=0 // pred_check_branch
    %110 = sbr.rel (0) target = $region73
  $region72: #{torch_model_forward.1} parent=0 // pred_region
    _
  $region73: #{torch_model_forward.1} parent=0 // pred_fallthru
    _
  // Predicated region
  $region74: #{torch_model_forward.1} parent=0 // pred_check
    _
  $region75: #{torch_model_forward.1} parent=0 // pred_check_branch
    %112 = sbr.rel (0) target = $region77
  $region76: #{torch_model_forward.1} parent=0 // pred_region
    _
  $region77: #{torch_model_forward.1} parent=0 // pred_fallthru
    _
  // Predicated region
  $region78: #{torch_model_forward.1} parent=0 // pred_check
    _
  $region79: #{torch_model_forward.1} parent=0 // pred_check_branch
    %114 = sbr.rel (0) target = $region81
  $region80: #{torch_model_forward.1} parent=0 // pred_region
    _
  $region81: #{torch_model_forward.1} parent=0 // pred_fallthru
    _
  // Predicated region
  $region82: #{torch_model_forward.1} parent=0 // pred_check
    _
  $region83: #{torch_model_forward.1} parent=0 // pred_check_branch
    %116 = sbr.rel (0) target = $region85
  $region84: #{torch_model_forward.1} parent=0 // pred_region
    _
  $region85: #{torch_model_forward.1} parent=0 // pred_fallthru
    _
  // Predicated region
  $region86: #{torch_model_forward.1} parent=0 // pred_check
    _
  $region87: #{torch_model_forward.1} parent=0 // pred_check_branch
    %118 = sbr.rel (0) target = $region89
  $region88: #{torch_model_forward.1} parent=0 // pred_region
    _
  $region89: #{torch_model_forward.1} parent=0 // pred_fallthru
    _
  // Predicated region
  $region90: #{torch_model_forward.1} parent=0 // pred_check
    _
  $region91: #{torch_model_forward.1} parent=0 // pred_check_branch
    %120 = sbr.rel (0) target = $region93
  $region92: #{torch_model_forward.1} parent=0 // pred_region
    _
  $region93: #{torch_model_forward.1} parent=0 // pred_fallthru
    _
  // Predicated region
  $region94: #{torch_model_forward.1} parent=0 // pred_check
    _
  $region95: #{torch_model_forward.1} parent=0 // pred_check_branch
    %122 = sbr.rel (0) target = $region97
  $region96: #{torch_model_forward.1} parent=0 // pred_region
    _
  $region97: #{torch_model_forward.1} parent=0 // pred_fallthru
    _
  // Predicated region
  $region98: #{torch_model_forward.1} parent=0 // pred_check
    _
  $region99: #{torch_model_forward.1} parent=0 // pred_check_branch
    %124 = sbr.rel (0) target = $region101
  $region100: #{torch_model_forward.1} parent=0 // pred_region
    _
  $region101: #{torch_model_forward.1} parent=0 // pred_fallthru
    _
  // Predicated region
  $region102: #{torch_model_forward.1} parent=0 // pred_check
    _
  $region103: #{torch_model_forward.1} parent=0 // pred_check_branch
    %126 = sbr.rel (0) target = $region105
  $region104: #{torch_model_forward.1} parent=0 // pred_region
    _
  $region105: #{torch_model_forward.1} parent=0 // pred_fallthru
    _
  // Predicated region
  $region106: #{torch_model_forward.1} parent=0 // pred_check
    _
  $region107: #{torch_model_forward.1} parent=0 // pred_check_branch
    %128 = sbr.rel (0) target = $region109
  $region108: #{torch_model_forward.1} parent=0 // pred_region
    _
  $region109: #{torch_model_forward.1} parent=0 // pred_fallthru
    _
  // Predicated region
  $region110: #{torch_model_forward.1} parent=0 // pred_check
    _
  $region111: #{torch_model_forward.1} parent=0 // pred_check_branch
    %130 = sbr.rel (0) target = $region113
  $region112: #{torch_model_forward.1} parent=0 // pred_region
    _
  $region113: #{torch_model_forward.1} parent=0 // pred_fallthru
    _
  // Predicated region
  $region114: #{torch_model_forward.1} parent=0 // pred_check
    _
  $region115: #{torch_model_forward.1} parent=0 // pred_check_branch
    %132 = sbr.rel (0) target = $region117
  $region116: #{torch_model_forward.1} parent=0 // pred_region
    _
  $region117: #{torch_model_forward.1} parent=0 // pred_fallthru
    _
  // Predicated region
  $region118: #{torch_model_forward.1} parent=0 // pred_check
    _
  $region119: #{torch_model_forward.1} parent=0 // pred_check_branch
    %134 = sbr.rel (0) target = $region121
  $region120: #{torch_model_forward.1} parent=0 // pred_region
    _
  $region121: #{torch_model_forward.1} parent=0 // pred_fallthru
    _
  // Predicated region
  $region122: #{torch_model_forward.1} parent=0 // pred_check
    _
  $region123: #{torch_model_forward.1} parent=0 // pred_check_branch
    %136 = sbr.rel (0) target = $region125
  $region124: #{torch_model_forward.1} parent=0 // pred_region
    _
  $region125: #{torch_model_forward.1} parent=0 // pred_fallthru
    _
  %v137 = vld [vmem:[%s1] sm:$0xff]
  %v138 = vld [vmem:[%s1 + $0x8] sm:$0xff]
  %v139 = vld [vmem:[%s3] sm:$0xff]
  %v140 = vld [vmem:[%s3 + $0x8] sm:$0xff]
  %v141 = vld [vmem:[%s11] sm:$0x1]
  %v142 = vld [vmem:[%s13] sm:$0x1]
  %vm143 = vcmask 64512
  %v144 = vsel %vm143, %v139, 0.0
  %v145 = vsel %vm143, %v140, 0.0
  %v146 = vadd.f32 %v144, %v145
  %v147 = vrot.slane %v146, 4
  %v148 = vadd.f32 %v146, %v147
  %v149 = vrot.slane %v148, 2
  %v150 = vadd.f32 %v148, %v149
  %v151 = vrot.slane %v150, 1
  %v152 = vadd.f32 %v150, %v151
  %v153 = vrcp.pop 16.0
  %v154 = vmul.f32 16.0, %v153
  %v155 = vsub.f32 1.0, %v154
  %v156 = vmul.f32 %v153, %v155
  %v157 = vadd.f32 %v153, %v156
  %vm158 = vweird.f32 %v153
  %v159 = vsel %vm158, %v153, %v157
  %v160 = vmul.f32 %v152, %v159
  %v161 = vsub.f32 %v139, %v160
  %v162 = vsub.f32 %v140, %v160
  %v163 = vmul.f32 %v161, %v161
  %v164 = vmul.f32 %v162, %v162
  %v165 = vsel %vm143, %v163, 0.0
  %v166 = vsel %vm143, %v164, 0.0
  %v167 = vadd.f32 %v165, %v166
  %v168 = vrot.slane %v167, 4
  %v169 = vadd.f32 %v167, %v168
  %v170 = vrot.slane %v169, 2
  %v171 = vadd.f32 %v169, %v170
  %v172 = vrot.slane %v171, 1
  %v173 = vadd.f32 %v171, %v172
  %v174 = vmul.f32 %v173, %v159
  %v175 = vadd.f32 %v174, 1e-05
  %v176 = vrsqrt.pop %v175
  %v177 = vmul.f32 %v176, %v175
  %v178 = vmul.f32 %v177, %v176
  %v179 = vmul.f32 0.5, %v178
  %v180 = vsub.f32 1.5, %v179
  %v181 = vmul.f32 %v176, %v180
  %vm182 = vweird.f32 %v175
  %vm183 = vweird.f32 %v176
  %vm184 = vmor %vm182, %vm183
  %v185 = vsel %vm184, %v176, %v181
  %v186 = vmul.f32 %v161, %v185
  %v187 = vmul.f32 %v162, %v185
  %v189 = vperm.slane %v141, 0
  %v191 = vmul.f32 %v186, %v189
  %v192 = vmul.f32 %v187, %v189
  %v194 = vperm.slane %v142, 0
  %v196 = vadd.f32 %v191, %v194
  %v197 = vadd.f32 %v192, %v194
  %v198 = vld [vmem:[%s15] sm:$0xff]
  %v199 = vld [vmem:[%s17] sm:$0x1]
  %v201 = vperm.slane %v199, 0
  %v204 = vsel %vm143, %v196, 0
  %v207 = vsel %vm143, %v197, 0
  %209 = vmatpush.msra.mxu0 0.0
  %210 = vmatpush.msra.mxu0 0.0
  %211 = vmatpush.msra.mxu0 0.0
  %212 = vmatpush.msra.mxu0 0.0
  %213 = vmatpush.msra.mxu0 0.0
  %214 = vmatpush.msra.mxu0 0.0
  %215 = vmatpush.msra.mxu0 0.0
  %216 = vmatpush.msra.mxu0 0.0
  %217 = vmatpush.msra.mxu0 0.0
  %218 = vmatpush.msra.mxu0 0.0
  %219 = vmatpush.msra.mxu0 0.0
  %220 = vmatpush.msra.mxu0 0.0
  %221 = vmatpush.msra.mxu0 0.0
  %222 = vmatpush.msra.mxu0 0.0
  %223 = vmatpush.msra.mxu0 0.0
  %224 = vmatpush.msra.mxu0 %v198
  %225 = vmatmul.f32.gmra.mxu0 %v204
  %v226 = vpop.f32.mrf.mxu0
  %v227 = vadd.f32 %v201, %v226
  %228 = vmatmul.f32.gmra.mxu0 %v207
  %v229 = vpop.f32.mrf.mxu0
  %v230 = vadd.f32 %v201, %v229
  %231 = vdwg.mxu0
  %v232 = vmul.f32 %v227, 0.5
  %v233 = vmul.f32 %v230, 0.5
  %v234 = vmul.f32 %v227, 0.70710677
  %v235 = vmul.f32 %v230, 0.70710677
  %v236 = vmul.f32 %v234, %v234
  %v237 = vmin.f32 16.0, %v236
  %v238 = vmul.f32 %v237, 2.1237322e-06
  %v239 = vadd.f32 %v238, 0.00028619796
  %v240 = vmul.f32 %v237, %v239
  %v241 = vadd.f32 %v240, 0.0036580483
  %v242 = vmul.f32 %v237, %v241
  %v243 = vadd.f32 %v242, 0.05243302
  %v244 = vmul.f32 %v237, %v243
  %v245 = vadd.f32 %v244, 0.18741608
  %v246 = vmul.f32 %v237, %v245
  %v247 = vadd.f32 %v246, 1.1283791
  %v248 = vmul.f32 %v234, %v247
  %v249 = vmul.f32 %v237, 3.8918573e-05
  %v250 = vadd.f32 %v249, 0.001143296
  %v251 = vmul.f32 %v237, %v250
  %v252 = vadd.f32 %v251, 0.014752088
  %v253 = vmul.f32 %v237, %v252
  %v254 = vadd.f32 %v253, 0.112945676
  %v255 = vmul.f32 %v237, %v254
  %v256 = vadd.f32 %v255, 0.4994258
  %v257 = vmul.f32 %v237, %v256
  %v258 = vadd.f32 %v257, 1.0
  %v259 = vrcp.pop %v258
  %v260 = vmul.f32 %v258, %v259
  %v261 = vsub.f32 1.0, %v260
  %v262 = vmul.f32 %v259, %v261
  %v263 = vadd.f32 %v259, %v262
  %vm264 = vweird.f32 %v258
  %vm265 = vweird.f32 %v259
  %vm266 = vmor %vm264, %vm265
  %v267 = vsel %vm266, %v259, %v263
  %v268 = vand.u32 2147483647, %v258
  %vm269 = vcmp.eq.f32.partialorder %v268, 8.507059e+37
  %v270 = vand.u32 %v258, 2147483648
  %v271 = vor.u32 1.1754944e-38, %v270
  %v272 = vsel %vm269, %v271, %v267
  %v273 = vmul.f32 %v248, %v272
  %v274 = vmin.f32 %v273, 1.0
  %v275 = vmax.f32 %v274, -1.0
  %v276 = vmul.f32 %v235, %v235
  %v277 = vmin.f32 16.0, %v276
  %v278 = vmul.f32 %v277, 2.1237322e-06
  %v279 = vadd.f32 %v278, 0.00028619796
  %v280 = vmul.f32 %v277, %v279
  %v281 = vadd.f32 %v280, 0.0036580483
  %v282 = vmul.f32 %v277, %v281
  %v283 = vadd.f32 %v282, 0.05243302
  %v284 = vmul.f32 %v277, %v283
  %v285 = vadd.f32 %v284, 0.18741608
  %v286 = vmul.f32 %v277, %v285
  %v287 = vadd.f32 %v286, 1.1283791
  %v288 = vmul.f32 %v235, %v287
  %v289 = vmul.f32 %v277, 3.8918573e-05
  %v290 = vadd.f32 %v289, 0.001143296
  %v291 = vmul.f32 %v277, %v290
  %v292 = vadd.f32 %v291, 0.014752088
  %v293 = vmul.f32 %v277, %v292
  %v294 = vadd.f32 %v293, 0.112945676
  %v295 = vmul.f32 %v277, %v294
  %v296 = vadd.f32 %v295, 0.4994258
  %v297 = vmul.f32 %v277, %v296
  %v298 = vadd.f32 %v297, 1.0
  %v299 = vrcp.pop %v298
  %v300 = vmul.f32 %v298, %v299
  %v301 = vsub.f32 1.0, %v300
  %v302 = vmul.f32 %v299, %v301
  %v303 = vadd.f32 %v299, %v302
  %vm304 = vweird.f32 %v298
  %vm305 = vweird.f32 %v299
  %vm306 = vmor %vm304, %vm305
  %v307 = vsel %vm306, %v299, %v303
  %v308 = vand.u32 2147483647, %v298
  %vm309 = vcmp.eq.f32.partialorder %v308, 8.507059e+37
  %v310 = vand.u32 %v298, 2147483648
  %v311 = vor.u32 1.1754944e-38, %v310
  %v312 = vsel %vm309, %v311, %v307
  %v313 = vmul.f32 %v288, %v312
  %v314 = vmin.f32 %v313, 1.0
  %v315 = vmax.f32 %v314, -1.0
  %v316 = vadd.f32 %v275, 1.0
  %v317 = vadd.f32 %v315, 1.0
  %v318 = vmul.f32 %v232, %v316
  %v319 = vmul.f32 %v233, %v317
  %v320 = vld [vmem:[%s19] sm:$0xff]
  %v321 = vld [vmem:[%s19 + $0x8] sm:$0xff]
  %v322 = vld [vmem:[%s19 + $0x10] sm:$0xff]
  %v323 = vld [vmem:[%s19 + $0x18] sm:$0xff]
  %v324 = vld [vmem:[%s19 + $0x20] sm:$0xff]
  %v325 = vld [vmem:[%s19 + $0x28] sm:$0xff]
  %v326 = vld [vmem:[%s19 + $0x30] sm:$0xff]
  %v327 = vld [vmem:[%s19 + $0x38] sm:$0xff]
  %vm328 = vcmask 130048
  %v330 = vsel %vm328, %v137, 0
  %v333 = vsel %vm328, %v138, 0
  %335 = vmatpush.msra.mxu0 0.0
  %336 = vmatpush.msra.mxu0 0.0
  %337 = vmatpush.msra.mxu0 0.0
  %338 = vmatpush.msra.mxu0 0.0
  %339 = vmatpush.msra.mxu0 0.0
  %340 = vmatpush.msra.mxu0 0.0
  %341 = vmatpush.msra.mxu0 0.0
  %342 = vmatpush.msra.mxu0 0.0
  %343 = vmatpush.msra.mxu0 0.0
  %344 = vmatpush.msra.mxu0 0.0
  %345 = vmatpush.msra.mxu0 0.0
  %346 = vmatpush.msra.mxu0 0.0
  %347 = vmatpush.msra.mxu0 0.0
  %348 = vmatpush.msra.mxu0 0.0
  %349 = vmatpush.msra.mxu0 %v319
  %350 = vmatpush.msra.mxu0 %v318
  %351 = vmatmul.f32.gmra.mxu0 %v330
  %v352 = vpop.f32.mrf.mxu0
  %v353 = vadd.f32 0.0, %v352
  %354 = vmatmul.f32.gmra.mxu0 %v333
  %v355 = vpop.f32.mrf.mxu0
  %v356 = vadd.f32 0.0, %v355
  %357 = vdwg.mxu0
  %358 = vmatpush.msra.mxu0 0.0
  %359 = vmatpush.msra.mxu0 0.0
  %360 = vmatpush.msra.mxu0 0.0
  %361 = vmatpush.msra.mxu0 0.0
  %362 = vmatpush.msra.mxu0 0.0
  %363 = vmatpush.msra.mxu0 0.0
  %364 = vmatpush.msra.mxu0 0.0
  %365 = vmatpush.msra.mxu0 0.0
  %366 = vmatpush.msra.mxu0 0.0
  %367 = vmatpush.msra.mxu0 0.0
  %368 = vmatpush.msra.mxu0 0.0
  %369 = vmatpush.msra.mxu0 0.0
  %370 = vmatpush.msra.mxu0 0.0
  %371 = vmatpush.msra.mxu0 0.0
  %372 = vmatpush.msra.mxu0 %v356
  %373 = vmatpush.msra.mxu0 %v353
  %374 = vmatmul.f32.gmra.mxu0 %v330
  %v375 = vpop.f32.mrf.mxu0
  %v376 = vadd.f32 0.0, %v375
  %377 = vmatmul.f32.gmra.mxu0 %v333
  %v378 = vpop.f32.mrf.mxu0
  %v379 = vadd.f32 0.0, %v378
  %380 = vdwg.mxu0
  %381 = vmatpush.msra.mxu0 0.0
  %382 = vmatpush.msra.mxu0 0.0
  %383 = vmatpush.msra.mxu0 0.0
  %384 = vmatpush.msra.mxu0 0.0
  %385 = vmatpush.msra.mxu0 0.0
  %386 = vmatpush.msra.mxu0 0.0
  %387 = vmatpush.msra.mxu0 0.0
  %388 = vmatpush.msra.mxu0 0.0
  %389 = vmatpush.msra.mxu0 0.0
  %390 = vmatpush.msra.mxu0 0.0
  %391 = vmatpush.msra.mxu0 0.0
  %392 = vmatpush.msra.mxu0 0.0
  %393 = vmatpush.msra.mxu0 0.0
  %394 = vmatpush.msra.mxu0 0.0
  %395 = vmatpush.msra.mxu0 %v379
  %396 = vmatpush.msra.mxu0 %v376
  %397 = vmatmul.f32.gmra.mxu0 %v330
  %v398 = vpop.f32.mrf.mxu0
  %v399 = vadd.f32 0.0, %v398
  %400 = vmatmul.f32.gmra.mxu0 %v333
  %v401 = vpop.f32.mrf.mxu0
  %v402 = vadd.f32 0.0, %v401
  %403 = vdwg.mxu0
  %406 = vrot.lane.b32.xlu0 %v353, 16
  %v407 = vpop.permute.xlu0 %406
  %408 = vrot.lane.b32.xlu0 %v356, 16
  %v409 = vpop.permute.xlu0 %408
  %414 = vrot.lane.b32.xlu0 %v376, 32
  %v415 = vpop.permute.xlu0 %414
  %416 = vrot.lane.b32.xlu0 %v379, 32
  %v417 = vpop.permute.xlu0 %416
  %422 = vrot.lane.b32.xlu0 %v399, 48
  %v423 = vpop.permute.xlu0 %422
  %424 = vrot.lane.b32.xlu0 %v402, 48
  %v425 = vpop.permute.xlu0 %424
  %v428 = vsel %vm328, %v318, %v407
  %v429 = vsel %vm328, %v319, %v409
  %vm430 = vcmask 261120
  %v431 = vsel %vm430, %v428, %v415
  %v432 = vsel %vm430, %v429, %v417
  %vm433 = vcmask 392192
  %v434 = vsel %vm433, %v431, %v423
  %v435 = vsel %vm433, %v432, %v425
  %v436 = vld [vmem:[%s21] sm:$0x1]
  %v438 = vperm.slane %v436, 0
  %vm440 = vcmask 523264
  %v442 = vsel %vm440, %v434, 0
  %v445 = vsel %vm440, %v435, 0
  %447 = vmatpush.msra.mxu0 0.0
  %448 = vmatpush.msra.mxu0 0.0
  %449 = vmatpush.msra.mxu0 0.0
  %450 = vmatpush.msra.mxu0 0.0
  %451 = vmatpush.msra.mxu0 0.0
  %452 = vmatpush.msra.mxu0 0.0
  %453 = vmatpush.msra.mxu0 0.0
  %454 = vmatpush.msra.mxu0 0.0
  %455 = vmatpush.msra.mxu0 %v327
  %456 = vmatpush.msra.mxu0 %v326
  %457 = vmatpush.msra.mxu0 %v325
  %458 = vmatpush.msra.mxu0 %v324
  %459 = vmatpush.msra.mxu0 %v323
  %460 = vmatpush.msra.mxu0 %v322
  %461 = vmatpush.msra.mxu0 %v321
  %462 = vmatpush.msra.mxu0 %v320
  %463 = vmatmul.f32.gmra.mxu0 %v442
  %v464 = vpop.f32.mrf.mxu0
  %v465 = vadd.f32 %v438, %v464
  %466 = vmatmul.f32.gmra.mxu0 %v445
  %v467 = vpop.f32.mrf.mxu0
  %v468 = vadd.f32 %v438, %v467
  %469 = vdwg.mxu0
  %v470 = vmul.f32 %v465, 0.5
  %v471 = vmul.f32 %v468, 0.5
  %v472 = vmul.f32 %v465, 0.70710677
  %v473 = vmul.f32 %v468, 0.70710677
  %v474 = vmul.f32 %v472, %v472
  %v475 = vmin.f32 16.0, %v474
  %v476 = vmul.f32 %v475, 2.1237322e-06
  %v477 = vadd.f32 %v476, 0.00028619796
  %v478 = vmul.f32 %v475, %v477
  %v479 = vadd.f32 %v478, 0.0036580483
  %v480 = vmul.f32 %v475, %v479
  %v481 = vadd.f32 %v480, 0.05243302
  %v482 = vmul.f32 %v475, %v481
  %v483 = vadd.f32 %v482, 0.18741608
  %v484 = vmul.f32 %v475, %v483
  %v485 = vadd.f32 %v484, 1.1283791
  %v486 = vmul.f32 %v472, %v485
  %v487 = vmul.f32 %v475, 3.8918573e-05
  %v488 = vadd.f32 %v487, 0.001143296
  %v489 = vmul.f32 %v475, %v488
  %v490 = vadd.f32 %v489, 0.014752088
  %v491 = vmul.f32 %v475, %v490
  %v492 = vadd.f32 %v491, 0.112945676
  %v493 = vmul.f32 %v475, %v492
  %v494 = vadd.f32 %v493, 0.4994258
  %v495 = vmul.f32 %v475, %v494
  %v496 = vadd.f32 %v495, 1.0
  %v497 = vrcp.pop %v496
  %v498 = vmul.f32 %v496, %v497
  %v499 = vsub.f32 1.0, %v498
  %v500 = vmul.f32 %v497, %v499
  %v501 = vadd.f32 %v497, %v500
  %vm502 = vweird.f32 %v496
  %vm503 = vweird.f32 %v497
  %vm504 = vmor %vm502, %vm503
  %v505 = vsel %vm504, %v497, %v501
  %v506 = vand.u32 2147483647, %v496
  %vm507 = vcmp.eq.f32.partialorder %v506, 8.507059e+37
  %v508 = vand.u32 %v496, 2147483648
  %v509 = vor.u32 1.1754944e-38, %v508
  %v510 = vsel %vm507, %v509, %v505
  %v511 = vmul.f32 %v486, %v510
  %v512 = vmin.f32 %v511, 1.0
  %v513 = vmax.f32 %v512, -1.0
  %v514 = vmul.f32 %v473, %v473
  %v515 = vmin.f32 16.0, %v514
  %v516 = vmul.f32 %v515, 2.1237322e-06
  %v517 = vadd.f32 %v516, 0.00028619796
  %v518 = vmul.f32 %v515, %v517
  %v519 = vadd.f32 %v518, 0.0036580483
  %v520 = vmul.f32 %v515, %v519
  %v521 = vadd.f32 %v520, 0.05243302
  %v522 = vmul.f32 %v515, %v521
  %v523 = vadd.f32 %v522, 0.18741608
  %v524 = vmul.f32 %v515, %v523
  %v525 = vadd.f32 %v524, 1.1283791
  %v526 = vmul.f32 %v473, %v525
  %v527 = vmul.f32 %v515, 3.8918573e-05
  %v528 = vadd.f32 %v527, 0.001143296
  %v529 = vmul.f32 %v515, %v528
  %v530 = vadd.f32 %v529, 0.014752088
  %v531 = vmul.f32 %v515, %v530
  %v532 = vadd.f32 %v531, 0.112945676
  %v533 = vmul.f32 %v515, %v532
  %v534 = vadd.f32 %v533, 0.4994258
  %v535 = vmul.f32 %v515, %v534
  %v536 = vadd.f32 %v535, 1.0
  %v537 = vrcp.pop %v536
  %v538 = vmul.f32 %v536, %v537
  %v539 = vsub.f32 1.0, %v538
  %v540 = vmul.f32 %v537, %v539
  %v541 = vadd.f32 %v537, %v540
  %vm542 = vweird.f32 %v536
  %vm543 = vweird.f32 %v537
  %vm544 = vmor %vm542, %vm543
  %v545 = vsel %vm544, %v537, %v541
  %v546 = vand.u32 2147483647, %v536
  %vm547 = vcmp.eq.f32.partialorder %v546, 8.507059e+37
  %v548 = vand.u32 %v536, 2147483648
  %v549 = vor.u32 1.1754944e-38, %v548
  %v550 = vsel %vm547, %v549, %v545
  %v551 = vmul.f32 %v526, %v550
  %v552 = vmin.f32 %v551, 1.0
  %v553 = vmax.f32 %v552, -1.0
  %v554 = vadd.f32 %v513, 1.0
  %v555 = vadd.f32 %v553, 1.0
  %v556 = vmul.f32 %v470, %v554
  %v557 = vmul.f32 %v471, %v555
  %v558 = vld [vmem:[%s23] sm:$0xff]
  %v559 = vld [vmem:[%s23 + $0x8] sm:$0xff]
  %v560 = vld [vmem:[%s25] sm:$0x1]
  %v562 = vperm.slane %v560, 0
  %v565 = vsel %vm328, %v556, 0
  %v568 = vsel %vm328, %v557, 0
  %570 = vmatpush.msra.mxu0 0.0
  %571 = vmatpush.msra.mxu0 0.0
  %572 = vmatpush.msra.mxu0 0.0
  %573 = vmatpush.msra.mxu0 0.0
  %574 = vmatpush.msra.mxu0 0.0
  %575 = vmatpush.msra.mxu0 0.0
  %576 = vmatpush.msra.mxu0 0.0
  %577 = vmatpush.msra.mxu0 0.0
  %578 = vmatpush.msra.mxu0 0.0
  %579 = vmatpush.msra.mxu0 0.0
  %580 = vmatpush.msra.mxu0 0.0
  %581 = vmatpush.msra.mxu0 0.0
  %582 = vmatpush.msra.mxu0 0.0
  %583 = vmatpush.msra.mxu0 0.0
  %584 = vmatpush.msra.mxu0 %v559
  %585 = vmatpush.msra.mxu0 %v558
  %586 = vmatmul.f32.gmra.mxu0 %v565
  %v587 = vpop.f32.mrf.mxu0
  %v588 = vadd.f32 %v562, %v587
  %589 = vmatmul.f32.gmra.mxu0 %v568
  %v590 = vpop.f32.mrf.mxu0
  %v591 = vadd.f32 %v562, %v590
  %592 = vdwg.mxu0
  %v593 = vmul.f32 %v588, 0.5
  %v594 = vmul.f32 %v591, 0.5
  %v595 = vmul.f32 %v588, 0.70710677
  %v596 = vmul.f32 %v591, 0.70710677
  %v597 = vmul.f32 %v595, %v595
  %v598 = vmin.f32 16.0, %v597
  %v599 = vmul.f32 %v598, 2.1237322e-06
  %v600 = vadd.f32 %v599, 0.00028619796
  %v601 = vmul.f32 %v598, %v600
  %v602 = vadd.f32 %v601, 0.0036580483
  %v603 = vmul.f32 %v598, %v602
  %v604 = vadd.f32 %v603, 0.05243302
  %v605 = vmul.f32 %v598, %v604
  %v606 = vadd.f32 %v605, 0.18741608
  %v607 = vmul.f32 %v598, %v606
  %v608 = vadd.f32 %v607, 1.1283791
  %v609 = vmul.f32 %v595, %v608
  %v610 = vmul.f32 %v598, 3.8918573e-05
  %v611 = vadd.f32 %v610, 0.001143296
  %v612 = vmul.f32 %v598, %v611
  %v613 = vadd.f32 %v612, 0.014752088
  %v614 = vmul.f32 %v598, %v613
  %v615 = vadd.f32 %v614, 0.112945676
  %v616 = vmul.f32 %v598, %v615
  %v617 = vadd.f32 %v616, 0.4994258
  %v618 = vmul.f32 %v598, %v617
  %v619 = vadd.f32 %v618, 1.0
  %v620 = vrcp.pop %v619
  %v621 = vmul.f32 %v619, %v620
  %v622 = vsub.f32 1.0, %v621
  %v623 = vmul.f32 %v620, %v622
  %v624 = vadd.f32 %v620, %v623
  %vm625 = vweird.f32 %v619
  %vm626 = vweird.f32 %v620
  %vm627 = vmor %vm625, %vm626
  %v628 = vsel %vm627, %v620, %v624
  %v629 = vand.u32 2147483647, %v619
  %vm630 = vcmp.eq.f32.partialorder %v629, 8.507059e+37
  %v631 = vand.u32 %v619, 2147483648
  %v632 = vor.u32 1.1754944e-38, %v631
  %v633 = vsel %vm630, %v632, %v628
  %v634 = vmul.f32 %v609, %v633
  %v635 = vmin.f32 %v634, 1.0
  %v636 = vmax.f32 %v635, -1.0
  %v637 = vmul.f32 %v596, %v596
  %v638 = vmin.f32 16.0, %v637
  %v639 = vmul.f32 %v638, 2.1237322e-06
  %v640 = vadd.f32 %v639, 0.00028619796
  %v641 = vmul.f32 %v638, %v640
  %v642 = vadd.f32 %v641, 0.0036580483
  %v643 = vmul.f32 %v638, %v642
  %v644 = vadd.f32 %v643, 0.05243302
  %v645 = vmul.f32 %v638, %v644
  %v646 = vadd.f32 %v645, 0.18741608
  %v647 = vmul.f32 %v638, %v646
  %v648 = vadd.f32 %v647, 1.1283791
  %v649 = vmul.f32 %v596, %v648
  %v650 = vmul.f32 %v638, 3.8918573e-05
  %v651 = vadd.f32 %v650, 0.001143296
  %v652 = vmul.f32 %v638, %v651
  %v653 = vadd.f32 %v652, 0.014752088
  %v654 = vmul.f32 %v638, %v653
  %v655 = vadd.f32 %v654, 0.112945676
  %v656 = vmul.f32 %v638, %v655
  %v657 = vadd.f32 %v656, 0.4994258
  %v658 = vmul.f32 %v638, %v657
  %v659 = vadd.f32 %v658, 1.0
  %v660 = vrcp.pop %v659
  %v661 = vmul.f32 %v659, %v660
  %v662 = vsub.f32 1.0, %v661
  %v663 = vmul.f32 %v660, %v662
  %v664 = vadd.f32 %v660, %v663
  %vm665 = vweird.f32 %v659
  %vm666 = vweird.f32 %v660
  %vm667 = vmor %vm665, %vm666
  %v668 = vsel %vm667, %v660, %v664
  %v669 = vand.u32 2147483647, %v659
  %vm670 = vcmp.eq.f32.partialorder %v669, 8.507059e+37
  %v671 = vand.u32 %v659, 2147483648
  %v672 = vor.u32 1.1754944e-38, %v671
  %v673 = vsel %vm670, %v672, %v668
  %v674 = vmul.f32 %v649, %v673
  %v675 = vmin.f32 %v674, 1.0
  %v676 = vmax.f32 %v675, -1.0
  %v677 = vadd.f32 %v636, 1.0
  %v678 = vadd.f32 %v676, 1.0
  %v679 = vmul.f32 %v593, %v677
  %v680 = vmul.f32 %v594, %v678
  %v681 = vld [vmem:[%s27] sm:$0xff]
  %v682 = vld [vmem:[%s27 + $0x8] sm:$0xff]
  %v683 = vld [vmem:[%s27 + $0x10] sm:$0xff]
  %v684 = vld [vmem:[%s27 + $0x18] sm:$0xff]
  %v685 = vld [vmem:[%s27 + $0x20] sm:$0xff]
  %v686 = vld [vmem:[%s27 + $0x28] sm:$0xff]
  %v687 = vld [vmem:[%s27 + $0x30] sm:$0xff]
  %v688 = vld [vmem:[%s27 + $0x38] sm:$0xff]
  %689 = vmatpush.msra.mxu0 0.0
  %690 = vmatpush.msra.mxu0 0.0
  %691 = vmatpush.msra.mxu0 0.0
  %692 = vmatpush.msra.mxu0 0.0
  %693 = vmatpush.msra.mxu0 0.0
  %694 = vmatpush.msra.mxu0 0.0
  %695 = vmatpush.msra.mxu0 0.0
  %696 = vmatpush.msra.mxu0 0.0
  %697 = vmatpush.msra.mxu0 0.0
  %698 = vmatpush.msra.mxu0 0.0
  %699 = vmatpush.msra.mxu0 0.0
  %700 = vmatpush.msra.mxu0 0.0
  %701 = vmatpush.msra.mxu0 0.0
  %702 = vmatpush.msra.mxu0 0.0
  %703 = vmatpush.msra.mxu0 %v680
  %704 = vmatpush.msra.mxu0 %v679
  %705 = vmatmul.f32.gmra.mxu0 %v330
  %v706 = vpop.f32.mrf.mxu0
  %v707 = vadd.f32 0.0, %v706
  %708 = vmatmul.f32.gmra.mxu0 %v333
  %v709 = vpop.f32.mrf.mxu0
  %v710 = vadd.f32 0.0, %v709
  %711 = vdwg.mxu0
  %712 = vmatpush.msra.mxu0 0.0
  %713 = vmatpush.msra.mxu0 0.0
  %714 = vmatpush.msra.mxu0 0.0
  %715 = vmatpush.msra.mxu0 0.0
  %716 = vmatpush.msra.mxu0 0.0
  %717 = vmatpush.msra.mxu0 0.0
  %718 = vmatpush.msra.mxu0 0.0
  %719 = vmatpush.msra.mxu0 0.0
  %720 = vmatpush.msra.mxu0 0.0
  %721 = vmatpush.msra.mxu0 0.0
  %722 = vmatpush.msra.mxu0 0.0
  %723 = vmatpush.msra.mxu0 0.0
  %724 = vmatpush.msra.mxu0 0.0
  %725 = vmatpush.msra.mxu0 0.0
  %726 = vmatpush.msra.mxu0 %v710
  %727 = vmatpush.msra.mxu0 %v707
  %728 = vmatmul.f32.gmra.mxu0 %v330
  %v729 = vpop.f32.mrf.mxu0
  %v730 = vadd.f32 0.0, %v729
  %731 = vmatmul.f32.gmra.mxu0 %v333
  %v732 = vpop.f32.mrf.mxu0
  %v733 = vadd.f32 0.0, %v732
  %734 = vdwg.mxu0
  %735 = vmatpush.msra.mxu0 0.0
  %736 = vmatpush.msra.mxu0 0.0
  %737 = vmatpush.msra.mxu0 0.0
  %738 = vmatpush.msra.mxu0 0.0
  %739 = vmatpush.msra.mxu0 0.0
  %740 = vmatpush.msra.mxu0 0.0
  %741 = vmatpush.msra.mxu0 0.0
  %742 = vmatpush.msra.mxu0 0.0
  %743 = vmatpush.msra.mxu0 0.0
  %744 = vmatpush.msra.mxu0 0.0
  %745 = vmatpush.msra.mxu0 0.0
  %746 = vmatpush.msra.mxu0 0.0
  %747 = vmatpush.msra.mxu0 0.0
  %748 = vmatpush.msra.mxu0 0.0
  %749 = vmatpush.msra.mxu0 %v733
  %750 = vmatpush.msra.mxu0 %v730
  %751 = vmatmul.f32.gmra.mxu0 %v330
  %v752 = vpop.f32.mrf.mxu0
  %v753 = vadd.f32 0.0, %v752
  %754 = vmatmul.f32.gmra.mxu0 %v333
  %v755 = vpop.f32.mrf.mxu0
  %v756 = vadd.f32 0.0, %v755
  %757 = vdwg.mxu0
  %760 = vrot.lane.b32.xlu0 %v707, 16
  %v761 = vpop.permute.xlu0 %760
  %762 = vrot.lane.b32.xlu0 %v710, 16
  %v763 = vpop.permute.xlu0 %762
  %768 = vrot.lane.b32.xlu0 %v730, 32
  %v769 = vpop.permute.xlu0 %768
  %770 = vrot.lane.b32.xlu0 %v733, 32
  %v771 = vpop.permute.xlu0 %770
  %776 = vrot.lane.b32.xlu0 %v753, 48
  %v777 = vpop.permute.xlu0 %776
  %778 = vrot.lane.b32.xlu0 %v756, 48
  %v779 = vpop.permute.xlu0 %778
  %v782 = vsel %vm328, %v679, %v761
  %v783 = vsel %vm328, %v680, %v763
  %v784 = vsel %vm430, %v782, %v769
  %v785 = vsel %vm430, %v783, %v771
  %v786 = vsel %vm433, %v784, %v777
  %v787 = vsel %vm433, %v785, %v779
  %v788 = vld [vmem:[%s29] sm:$0x1]
  %v790 = vperm.slane %v788, 0
  %v793 = vsel %vm440, %v786, 0
  %v796 = vsel %vm440, %v787, 0
  %798 = vmatpush.msra.mxu0 0.0
  %799 = vmatpush.msra.mxu0 0.0
  %800 = vmatpush.msra.mxu0 0.0
  %801 = vmatpush.msra.mxu0 0.0
  %802 = vmatpush.msra.mxu0 0.0
  %803 = vmatpush.msra.mxu0 0.0
  %804 = vmatpush.msra.mxu0 0.0
  %805 = vmatpush.msra.mxu0 0.0
  %806 = vmatpush.msra.mxu0 %v688
  %807 = vmatpush.msra.mxu0 %v687
  %808 = vmatpush.msra.mxu0 %v686
  %809 = vmatpush.msra.mxu0 %v685
  %810 = vmatpush.msra.mxu0 %v684
  %811 = vmatpush.msra.mxu0 %v683
  %812 = vmatpush.msra.mxu0 %v682
  %813 = vmatpush.msra.mxu0 %v681
  %814 = vmatmul.f32.gmra.mxu0 %v793
  %v815 = vpop.f32.mrf.mxu0
  %v816 = vadd.f32 %v790, %v815
  %817 = vmatmul.f32.gmra.mxu0 %v796
  %v818 = vpop.f32.mrf.mxu0
  %v819 = vadd.f32 %v790, %v818
  %820 = vdwg.mxu0
  %v821 = vmul.f32 %v816, 0.5
  %v822 = vmul.f32 %v819, 0.5
  %v823 = vmul.f32 %v816, 0.70710677
  %v824 = vmul.f32 %v819, 0.70710677
  %v825 = vmul.f32 %v823, %v823
  %v826 = vmin.f32 16.0, %v825
  %v827 = vmul.f32 %v826, 2.1237322e-06
  %v828 = vadd.f32 %v827, 0.00028619796
  %v829 = vmul.f32 %v826, %v828
  %v830 = vadd.f32 %v829, 0.0036580483
  %v831 = vmul.f32 %v826, %v830
  %v832 = vadd.f32 %v831, 0.05243302
  %v833 = vmul.f32 %v826, %v832
  %v834 = vadd.f32 %v833, 0.18741608
  %v835 = vmul.f32 %v826, %v834
  %v836 = vadd.f32 %v835, 1.1283791
  %v837 = vmul.f32 %v823, %v836
  %v838 = vmul.f32 %v826, 3.8918573e-05
  %v839 = vadd.f32 %v838, 0.001143296
  %v840 = vmul.f32 %v826, %v839
  %v841 = vadd.f32 %v840, 0.014752088
  %v842 = vmul.f32 %v826, %v841
  %v843 = vadd.f32 %v842, 0.112945676
  %v844 = vmul.f32 %v826, %v843
  %v845 = vadd.f32 %v844, 0.4994258
  %v846 = vmul.f32 %v826, %v845
  %v847 = vadd.f32 %v846, 1.0
  %v848 = vrcp.pop %v847
  %v849 = vmul.f32 %v847, %v848
  %v850 = vsub.f32 1.0, %v849
  %v851 = vmul.f32 %v848, %v850
  %v852 = vadd.f32 %v848, %v851
  %vm853 = vweird.f32 %v847
  %vm854 = vweird.f32 %v848
  %vm855 = vmor %vm853, %vm854
  %v856 = vsel %vm855, %v848, %v852
  %v857 = vand.u32 2147483647, %v847
  %vm858 = vcmp.eq.f32.partialorder %v857, 8.507059e+37
  %v859 = vand.u32 %v847, 2147483648
  %v860 = vor.u32 1.1754944e-38, %v859
  %v861 = vsel %vm858, %v860, %v856
  %v862 = vmul.f32 %v837, %v861
  %v863 = vmin.f32 %v862, 1.0
  %v864 = vmax.f32 %v863, -1.0
  %v865 = vmul.f32 %v824, %v824
  %v866 = vmin.f32 16.0, %v865
  %v867 = vmul.f32 %v866, 2.1237322e-06
  %v868 = vadd.f32 %v867, 0.00028619796
  %v869 = vmul.f32 %v866, %v868
  %v870 = vadd.f32 %v869, 0.0036580483
  %v871 = vmul.f32 %v866, %v870
  %v872 = vadd.f32 %v871, 0.05243302
  %v873 = vmul.f32 %v866, %v872
  %v874 = vadd.f32 %v873, 0.18741608
  %v875 = vmul.f32 %v866, %v874
  %v876 = vadd.f32 %v875, 1.1283791
  %v877 = vmul.f32 %v824, %v876
  %v878 = vmul.f32 %v866, 3.8918573e-05
  %v879 = vadd.f32 %v878, 0.001143296
  %v880 = vmul.f32 %v866, %v879
  %v881 = vadd.f32 %v880, 0.014752088
  %v882 = vmul.f32 %v866, %v881
  %v883 = vadd.f32 %v882, 0.112945676
  %v884 = vmul.f32 %v866, %v883
  %v885 = vadd.f32 %v884, 0.4994258
  %v886 = vmul.f32 %v866, %v885
  %v887 = vadd.f32 %v886, 1.0
  %v888 = vrcp.pop %v887
  %v889 = vmul.f32 %v887, %v888
  %v890 = vsub.f32 1.0, %v889
  %v891 = vmul.f32 %v888, %v890
  %v892 = vadd.f32 %v888, %v891
  %vm893 = vweird.f32 %v887
  %vm894 = vweird.f32 %v888
  %vm895 = vmor %vm893, %vm894
  %v896 = vsel %vm895, %v888, %v892
  %v897 = vand.u32 2147483647, %v887
  %vm898 = vcmp.eq.f32.partialorder %v897, 8.507059e+37
  %v899 = vand.u32 %v887, 2147483648
  %v900 = vor.u32 1.1754944e-38, %v899
  %v901 = vsel %vm898, %v900, %v896
  %v902 = vmul.f32 %v877, %v901
  %v903 = vmin.f32 %v902, 1.0
  %v904 = vmax.f32 %v903, -1.0
  %v905 = vadd.f32 %v864, 1.0
  %v906 = vadd.f32 %v904, 1.0
  %v907 = vmul.f32 %v821, %v905
  %v908 = vmul.f32 %v822, %v906
  %911 = vrot.lane.b32.xlu0 %v907, 8
  %v912 = vpop.permute.xlu0 %911
  %913 = vrot.lane.b32.xlu0 %v908, 8
  %v914 = vpop.permute.xlu0 %913
  %v917 = vsel %vm143, %v196, %v912
  %v918 = vsel %vm143, %v197, %v914
  %v919 = vld [vmem:[%s31] sm:$0xff]
  %v920 = vld [vmem:[%s31 + $0x8] sm:$0xff]
  %v921 = vld [vmem:[%s31 + $0x10] sm:$0xff]
  %v922 = vld [vmem:[%s33] sm:$0x1]
  %v924 = vperm.slane %v922, 0
  %vm926 = vcmask 195584
  %v928 = vsel %vm926, %v917, 0
  %v931 = vsel %vm926, %v918, 0
  %933 = vmatpush.msra.mxu0 0.0
  %934 = vmatpush.msra.mxu0 0.0
  %935 = vmatpush.msra.mxu0 0.0
  %936 = vmatpush.msra.mxu0 0.0
  %937 = vmatpush.msra.mxu0 0.0
  %938 = vmatpush.msra.mxu0 0.0
  %939 = vmatpush.msra.mxu0 0.0
  %940 = vmatpush.msra.mxu0 0.0
  %941 = vmatpush.msra.mxu0 0.0
  %942 = vmatpush.msra.mxu0 0.0
  %943 = vmatpush.msra.mxu0 0.0
  %944 = vmatpush.msra.mxu0 0.0
  %945 = vmatpush.msra.mxu0 0.0
  %946 = vmatpush.msra.mxu0 %v921
  %947 = vmatpush.msra.mxu0 %v920
  %948 = vmatpush.msra.mxu0 %v919
  %949 = vmatmul.f32.gmra.mxu0 %v928
  %v950 = vpop.f32.mrf.mxu0
  %v951 = vadd.f32 %v924, %v950
  %952 = vmatmul.f32.gmra.mxu0 %v931
  %v953 = vpop.f32.mrf.mxu0
  %v954 = vadd.f32 %v924, %v953
  %955 = vdwg.mxu0
  %v956 = vmul.f32 %v951, 0.5
  %v957 = vmul.f32 %v954, 0.5
  %v958 = vmul.f32 %v951, 0.70710677
  %v959 = vmul.f32 %v954, 0.70710677
  %v960 = vmul.f32 %v958, %v958
  %v961 = vmin.f32 16.0, %v960
  %v962 = vmul.f32 %v961, 2.1237322e-06
  %v963 = vadd.f32 %v962, 0.00028619796
  %v964 = vmul.f32 %v961, %v963
  %v965 = vadd.f32 %v964, 0.0036580483
  %v966 = vmul.f32 %v961, %v965
  %v967 = vadd.f32 %v966, 0.05243302
  %v968 = vmul.f32 %v961, %v967
  %v969 = vadd.f32 %v968, 0.18741608
  %v970 = vmul.f32 %v961, %v969
  %v971 = vadd.f32 %v970, 1.1283791
  %v972 = vmul.f32 %v958, %v971
  %v973 = vmul.f32 %v961, 3.8918573e-05
  %v974 = vadd.f32 %v973, 0.001143296
  %v975 = vmul.f32 %v961, %v974
  %v976 = vadd.f32 %v975, 0.014752088
  %v977 = vmul.f32 %v961, %v976
  %v978 = vadd.f32 %v977, 0.112945676
  %v979 = vmul.f32 %v961, %v978
  %v980 = vadd.f32 %v979, 0.4994258
  %v981 = vmul.f32 %v961, %v980
  %v982 = vadd.f32 %v981, 1.0
  %v983 = vrcp.pop %v982
  %v984 = vmul.f32 %v982, %v983
  %v985 = vsub.f32 1.0, %v984
  %v986 = vmul.f32 %v983, %v985
  %v987 = vadd.f32 %v983, %v986
  %vm988 = vweird.f32 %v982
  %vm989 = vweird.f32 %v983
  %vm990 = vmor %vm988, %vm989
  %v991 = vsel %vm990, %v983, %v987
  %v992 = vand.u32 2147483647, %v982
  %vm993 = vcmp.eq.f32.partialorder %v992, 8.507059e+37
  %v994 = vand.u32 %v982, 2147483648
  %v995 = vor.u32 1.1754944e-38, %v994
  %v996 = vsel %vm993, %v995, %v991
  %v997 = vmul.f32 %v972, %v996
  %v998 = vmin.f32 %v997, 1.0
  %v999 = vmax.f32 %v998, -1.0
  %v1000 = vmul.f32 %v959, %v959
  %v1001 = vmin.f32 16.0, %v1000
  %v1002 = vmul.f32 %v1001, 2.1237322e-06
  %v1003 = vadd.f32 %v1002, 0.00028619796
  %v1004 = vmul.f32 %v1001, %v1003
  %v1005 = vadd.f32 %v1004, 0.0036580483
  %v1006 = vmul.f32 %v1001, %v1005
  %v1007 = vadd.f32 %v1006, 0.05243302
  %v1008 = vmul.f32 %v1001, %v1007
  %v1009 = vadd.f32 %v1008, 0.18741608
  %v1010 = vmul.f32 %v1001, %v1009
  %v1011 = vadd.f32 %v1010, 1.1283791
  %v1012 = vmul.f32 %v959, %v1011
  %v1013 = vmul.f32 %v1001, 3.8918573e-05
  %v1014 = vadd.f32 %v1013, 0.001143296
  %v1015 = vmul.f32 %v1001, %v1014
  %v1016 = vadd.f32 %v1015, 0.014752088
  %v1017 = vmul.f32 %v1001, %v1016
  %v1018 = vadd.f32 %v1017, 0.112945676
  %v1019 = vmul.f32 %v1001, %v1018
  %v1020 = vadd.f32 %v1019, 0.4994258
  %v1021 = vmul.f32 %v1001, %v1020
  %v1022 = vadd.f32 %v1021, 1.0
  %v1023 = vrcp.pop %v1022
  %v1024 = vmul.f32 %v1022, %v1023
  %v1025 = vsub.f32 1.0, %v1024
  %v1026 = vmul.f32 %v1023, %v1025
  %v1027 = vadd.f32 %v1023, %v1026
  %vm1028 = vweird.f32 %v1022
  %vm1029 = vweird.f32 %v1023
  %vm1030 = vmor %vm1028, %vm1029
  %v1031 = vsel %vm1030, %v1023, %v1027
  %v1032 = vand.u32 2147483647, %v1022
  %vm1033 = vcmp.eq.f32.partialorder %v1032, 8.507059e+37
  %v1034 = vand.u32 %v1022, 2147483648
  %v1035 = vor.u32 1.1754944e-38, %v1034
  %v1036 = vsel %vm1033, %v1035, %v1031
  %v1037 = vmul.f32 %v1012, %v1036
  %v1038 = vmin.f32 %v1037, 1.0
  %v1039 = vmax.f32 %v1038, -1.0
  %v1040 = vadd.f32 %v999, 1.0
  %v1041 = vadd.f32 %v1039, 1.0
  %v1042 = vmul.f32 %v956, %v1040
  %v1043 = vmul.f32 %v957, %v1041
  %v1044 = vld [vmem:[%s35] sm:$0xff]
  %v1045 = vld [vmem:[%s35 + $0x8] sm:$0xff]
  %v1046 = vld [vmem:[%s37] sm:$0x1]
  %v1048 = vperm.slane %v1046, 0
  %v1051 = vsel %vm328, %v1042, 0
  %v1054 = vsel %vm328, %v1043, 0
  %1056 = vmatpush.msra.mxu0 0.0
  %1057 = vmatpush.msra.mxu0 0.0
  %1058 = vmatpush.msra.mxu0 0.0
  %1059 = vmatpush.msra.mxu0 0.0
  %1060 = vmatpush.msra.mxu0 0.0
  %1061 = vmatpush.msra.mxu0 0.0
  %1062 = vmatpush.msra.mxu0 0.0
  %1063 = vmatpush.msra.mxu0 0.0
  %1064 = vmatpush.msra.mxu0 0.0
  %1065 = vmatpush.msra.mxu0 0.0
  %1066 = vmatpush.msra.mxu0 0.0
  %1067 = vmatpush.msra.mxu0 0.0
  %1068 = vmatpush.msra.mxu0 0.0
  %1069 = vmatpush.msra.mxu0 0.0
  %1070 = vmatpush.msra.mxu0 %v1045
  %1071 = vmatpush.msra.mxu0 %v1044
  %1072 = vmatmul.f32.gmra.mxu0 %v1051
  %v1073 = vpop.f32.mrf.mxu0
  %v1074 = vadd.f32 %v1048, %v1073
  %1075 = vmatmul.f32.gmra.mxu0 %v1054
  %v1076 = vpop.f32.mrf.mxu0
  %v1077 = vadd.f32 %v1048, %v1076
  %1078 = vdwg.mxu0
  %v1079 = vmul.f32 %v1074, 0.5
  %v1080 = vmul.f32 %v1077, 0.5
  %v1081 = vmul.f32 %v1074, 0.70710677
  %v1082 = vmul.f32 %v1077, 0.70710677
  %v1083 = vmul.f32 %v1081, %v1081
  %v1084 = vmin.f32 16.0, %v1083
  %v1085 = vmul.f32 %v1084, 2.1237322e-06
  %v1086 = vadd.f32 %v1085, 0.00028619796
  %v1087 = vmul.f32 %v1084, %v1086
  %v1088 = vadd.f32 %v1087, 0.0036580483
  %v1089 = vmul.f32 %v1084, %v1088
  %v1090 = vadd.f32 %v1089, 0.05243302
  %v1091 = vmul.f32 %v1084, %v1090
  %v1092 = vadd.f32 %v1091, 0.18741608
  %v1093 = vmul.f32 %v1084, %v1092
  %v1094 = vadd.f32 %v1093, 1.1283791
  %v1095 = vmul.f32 %v1081, %v1094
  %v1096 = vmul.f32 %v1084, 3.8918573e-05
  %v1097 = vadd.f32 %v1096, 0.001143296
  %v1098 = vmul.f32 %v1084, %v1097
  %v1099 = vadd.f32 %v1098, 0.014752088
  %v1100 = vmul.f32 %v1084, %v1099
  %v1101 = vadd.f32 %v1100, 0.112945676
  %v1102 = vmul.f32 %v1084, %v1101
  %v1103 = vadd.f32 %v1102, 0.4994258
  %v1104 = vmul.f32 %v1084, %v1103
  %v1105 = vadd.f32 %v1104, 1.0
  %v1106 = vrcp.pop %v1105
  %v1107 = vmul.f32 %v1105, %v1106
  %v1108 = vsub.f32 1.0, %v1107
  %v1109 = vmul.f32 %v1106, %v1108
  %v1110 = vadd.f32 %v1106, %v1109
  %vm1111 = vweird.f32 %v1105
  %vm1112 = vweird.f32 %v1106
  %vm1113 = vmor %vm1111, %vm1112
  %v1114 = vsel %vm1113, %v1106, %v1110
  %v1115 = vand.u32 2147483647, %v1105
  %vm1116 = vcmp.eq.f32.partialorder %v1115, 8.507059e+37
  %v1117 = vand.u32 %v1105, 2147483648
  %v1118 = vor.u32 1.1754944e-38, %v1117
  %v1119 = vsel %vm1116, %v1118, %v1114
  %v1120 = vmul.f32 %v1095, %v1119
  %v1121 = vmin.f32 %v1120, 1.0
  %v1122 = vmax.f32 %v1121, -1.0
  %v1123 = vmul.f32 %v1082, %v1082
  %v1124 = vmin.f32 16.0, %v1123
  %v1125 = vmul.f32 %v1124, 2.1237322e-06
  %v1126 = vadd.f32 %v1125, 0.00028619796
  %v1127 = vmul.f32 %v1124, %v1126
  %v1128 = vadd.f32 %v1127, 0.0036580483
  %v1129 = vmul.f32 %v1124, %v1128
  %v1130 = vadd.f32 %v1129, 0.05243302
  %v1131 = vmul.f32 %v1124, %v1130
  %v1132 = vadd.f32 %v1131, 0.18741608
  %v1133 = vmul.f32 %v1124, %v1132
  %v1134 = vadd.f32 %v1133, 1.1283791
  %v1135 = vmul.f32 %v1082, %v1134
  %v1136 = vmul.f32 %v1124, 3.8918573e-05
  %v1137 = vadd.f32 %v1136, 0.001143296
  %v1138 = vmul.f32 %v1124, %v1137
  %v1139 = vadd.f32 %v1138, 0.014752088
  %v1140 = vmul.f32 %v1124, %v1139
  %v1141 = vadd.f32 %v1140, 0.112945676
  %v1142 = vmul.f32 %v1124, %v1141
  %v1143 = vadd.f32 %v1142, 0.4994258
  %v1144 = vmul.f32 %v1124, %v1143
  %v1145 = vadd.f32 %v1144, 1.0
  %v1146 = vrcp.pop %v1145
  %v1147 = vmul.f32 %v1145, %v1146
  %v1148 = vsub.f32 1.0, %v1147
  %v1149 = vmul.f32 %v1146, %v1148
  %v1150 = vadd.f32 %v1146, %v1149
  %vm1151 = vweird.f32 %v1145
  %vm1152 = vweird.f32 %v1146
  %vm1153 = vmor %vm1151, %vm1152
  %v1154 = vsel %vm1153, %v1146, %v1150
  %v1155 = vand.u32 2147483647, %v1145
  %vm1156 = vcmp.eq.f32.partialorder %v1155, 8.507059e+37
  %v1157 = vand.u32 %v1145, 2147483648
  %v1158 = vor.u32 1.1754944e-38, %v1157
  %v1159 = vsel %vm1156, %v1158, %v1154
  %v1160 = vmul.f32 %v1135, %v1159
  %v1161 = vmin.f32 %v1160, 1.0
  %v1162 = vmax.f32 %v1161, -1.0
  %v1163 = vadd.f32 %v1122, 1.0
  %v1164 = vadd.f32 %v1162, 1.0
  %v1165 = vmul.f32 %v1079, %v1163
  %v1166 = vmul.f32 %v1080, %v1164
  %v1167 = vld [vmem:[%s39] sm:$0xff]
  %v1168 = vld [vmem:[%s39 + $0x8] sm:$0xff]
  %v1169 = vld [vmem:[%s41] sm:$0x1]
  %v1171 = vperm.slane %v1169, 0
  %v1174 = vsel %vm328, %v1165, 0
  %v1177 = vsel %vm328, %v1166, 0
  %1179 = vmatpush.msra.mxu0 0.0
  %1180 = vmatpush.msra.mxu0 0.0
  %1181 = vmatpush.msra.mxu0 0.0
  %1182 = vmatpush.msra.mxu0 0.0
  %1183 = vmatpush.msra.mxu0 0.0
  %1184 = vmatpush.msra.mxu0 0.0
  %1185 = vmatpush.msra.mxu0 0.0
  %1186 = vmatpush.msra.mxu0 0.0
  %1187 = vmatpush.msra.mxu0 0.0
  %1188 = vmatpush.msra.mxu0 0.0
  %1189 = vmatpush.msra.mxu0 0.0
  %1190 = vmatpush.msra.mxu0 0.0
  %1191 = vmatpush.msra.mxu0 0.0
  %1192 = vmatpush.msra.mxu0 0.0
  %1193 = vmatpush.msra.mxu0 %v1168
  %1194 = vmatpush.msra.mxu0 %v1167
  %1195 = vmatmul.f32.gmra.mxu0 %v1174
  %v1196 = vpop.f32.mrf.mxu0
  %v1197 = vadd.f32 %v1171, %v1196
  %1198 = vmatmul.f32.gmra.mxu0 %v1177
  %v1199 = vpop.f32.mrf.mxu0
  %v1200 = vadd.f32 %v1171, %v1199
  %1201 = vdwg.mxu0
  %v1202 = vmul.f32 %v1197, 0.5
  %v1203 = vmul.f32 %v1200, 0.5
  %v1204 = vmul.f32 %v1197, 0.70710677
  %v1205 = vmul.f32 %v1200, 0.70710677
  %v1206 = vmul.f32 %v1204, %v1204
  %v1207 = vmin.f32 16.0, %v1206
  %v1208 = vmul.f32 %v1207, 2.1237322e-06
  %v1209 = vadd.f32 %v1208, 0.00028619796
  %v1210 = vmul.f32 %v1207, %v1209
  %v1211 = vadd.f32 %v1210, 0.0036580483
  %v1212 = vmul.f32 %v1207, %v1211
  %v1213 = vadd.f32 %v1212, 0.05243302
  %v1214 = vmul.f32 %v1207, %v1213
  %v1215 = vadd.f32 %v1214, 0.18741608
  %v1216 = vmul.f32 %v1207, %v1215
  %v1217 = vadd.f32 %v1216, 1.1283791
  %v1218 = vmul.f32 %v1204, %v1217
  %v1219 = vmul.f32 %v1207, 3.8918573e-05
  %v1220 = vadd.f32 %v1219, 0.001143296
  %v1221 = vmul.f32 %v1207, %v1220
  %v1222 = vadd.f32 %v1221, 0.014752088
  %v1223 = vmul.f32 %v1207, %v1222
  %v1224 = vadd.f32 %v1223, 0.112945676
  %v1225 = vmul.f32 %v1207, %v1224
  %v1226 = vadd.f32 %v1225, 0.4994258
  %v1227 = vmul.f32 %v1207, %v1226
  %v1228 = vadd.f32 %v1227, 1.0
  %v1229 = vrcp.pop %v1228
  %v1230 = vmul.f32 %v1228, %v1229
  %v1231 = vsub.f32 1.0, %v1230
  %v1232 = vmul.f32 %v1229, %v1231
  %v1233 = vadd.f32 %v1229, %v1232
  %vm1234 = vweird.f32 %v1228
  %vm1235 = vweird.f32 %v1229
  %vm1236 = vmor %vm1234, %vm1235
  %v1237 = vsel %vm1236, %v1229, %v1233
  %v1238 = vand.u32 2147483647, %v1228
  %vm1239 = vcmp.eq.f32.partialorder %v1238, 8.507059e+37
  %v1240 = vand.u32 %v1228, 2147483648
  %v1241 = vor.u32 1.1754944e-38, %v1240
  %v1242 = vsel %vm1239, %v1241, %v1237
  %v1243 = vmul.f32 %v1218, %v1242
  %v1244 = vmin.f32 %v1243, 1.0
  %v1245 = vmax.f32 %v1244, -1.0
  %v1246 = vmul.f32 %v1205, %v1205
  %v1247 = vmin.f32 16.0, %v1246
  %v1248 = vmul.f32 %v1247, 2.1237322e-06
  %v1249 = vadd.f32 %v1248, 0.00028619796
  %v1250 = vmul.f32 %v1247, %v1249
  %v1251 = vadd.f32 %v1250, 0.0036580483
  %v1252 = vmul.f32 %v1247, %v1251
  %v1253 = vadd.f32 %v1252, 0.05243302
  %v1254 = vmul.f32 %v1247, %v1253
  %v1255 = vadd.f32 %v1254, 0.18741608
  %v1256 = vmul.f32 %v1247, %v1255
  %v1257 = vadd.f32 %v1256, 1.1283791
  %v1258 = vmul.f32 %v1205, %v1257
  %v1259 = vmul.f32 %v1247, 3.8918573e-05
  %v1260 = vadd.f32 %v1259, 0.001143296
  %v1261 = vmul.f32 %v1247, %v1260
  %v1262 = vadd.f32 %v1261, 0.014752088
  %v1263 = vmul.f32 %v1247, %v1262
  %v1264 = vadd.f32 %v1263, 0.112945676
  %v1265 = vmul.f32 %v1247, %v1264
  %v1266 = vadd.f32 %v1265, 0.4994258
  %v1267 = vmul.f32 %v1247, %v1266
  %v1268 = vadd.f32 %v1267, 1.0
  %v1269 = vrcp.pop %v1268
  %v1270 = vmul.f32 %v1268, %v1269
  %v1271 = vsub.f32 1.0, %v1270
  %v1272 = vmul.f32 %v1269, %v1271
  %v1273 = vadd.f32 %v1269, %v1272
  %vm1274 = vweird.f32 %v1268
  %vm1275 = vweird.f32 %v1269
  %vm1276 = vmor %vm1274, %vm1275
  %v1277 = vsel %vm1276, %v1269, %v1273
  %v1278 = vand.u32 2147483647, %v1268
  %vm1279 = vcmp.eq.f32.partialorder %v1278, 8.507059e+37
  %v1280 = vand.u32 %v1268, 2147483648
  %v1281 = vor.u32 1.1754944e-38, %v1280
  %v1282 = vsel %vm1279, %v1281, %v1277
  %v1283 = vmul.f32 %v1258, %v1282
  %v1284 = vmin.f32 %v1283, 1.0
  %v1285 = vmax.f32 %v1284, -1.0
  %v1286 = vadd.f32 %v1245, 1.0
  %v1287 = vadd.f32 %v1285, 1.0
  %v1288 = vmul.f32 %v1202, %v1286
  %v1289 = vmul.f32 %v1203, %v1287
  %v1290 = vld [vmem:[%s43] sm:$0xff]
  %v1291 = vld [vmem:[%s43 + $0x8] sm:$0xff]
  %v1292 = vld [vmem:[%s43 + $0x10] sm:$0xff]
  %v1293 = vld [vmem:[%s43 + $0x18] sm:$0xff]
  %v1294 = vld [vmem:[%s45] sm:$0x1]
  %v1296 = vperm.slane %v1294, 0
  %v1299 = vsel %vm430, %v1288, 0
  %v1302 = vsel %vm430, %v1289, 0
  %1304 = vmatpush.msra.mxu0 0.0
  %1305 = vmatpush.msra.mxu0 0.0
  %1306 = vmatpush.msra.mxu0 0.0
  %1307 = vmatpush.msra.mxu0 0.0
  %1308 = vmatpush.msra.mxu0 0.0
  %1309 = vmatpush.msra.mxu0 0.0
  %1310 = vmatpush.msra.mxu0 0.0
  %1311 = vmatpush.msra.mxu0 0.0
  %1312 = vmatpush.msra.mxu0 0.0
  %1313 = vmatpush.msra.mxu0 0.0
  %1314 = vmatpush.msra.mxu0 0.0
  %1315 = vmatpush.msra.mxu0 0.0
  %1316 = vmatpush.msra.mxu0 %v1293
  %1317 = vmatpush.msra.mxu0 %v1292
  %1318 = vmatpush.msra.mxu0 %v1291
  %1319 = vmatpush.msra.mxu0 %v1290
  %1320 = vmatmul.f32.gmra.mxu0 %v1299
  %v1321 = vpop.f32.mrf.mxu0
  %v1322 = vadd.f32 %v1296, %v1321
  %1323 = vmatmul.f32.gmra.mxu0 %v1302
  %v1324 = vpop.f32.mrf.mxu0
  %v1325 = vadd.f32 %v1296, %v1324
  %1326 = vdwg.mxu0
  %v1327 = vmul.f32 %v1322, 0.5
  %v1328 = vmul.f32 %v1325, 0.5
  %v1329 = vmul.f32 %v1322, 0.70710677
  %v1330 = vmul.f32 %v1325, 0.70710677
  %v1331 = vmul.f32 %v1329, %v1329
  %v1332 = vmin.f32 16.0, %v1331
  %v1333 = vmul.f32 %v1332, 2.1237322e-06
  %v1334 = vadd.f32 %v1333, 0.00028619796
  %v1335 = vmul.f32 %v1332, %v1334
  %v1336 = vadd.f32 %v1335, 0.0036580483
  %v1337 = vmul.f32 %v1332, %v1336
  %v1338 = vadd.f32 %v1337, 0.05243302
  %v1339 = vmul.f32 %v1332, %v1338
  %v1340 = vadd.f32 %v1339, 0.18741608
  %v1341 = vmul.f32 %v1332, %v1340
  %v1342 = vadd.f32 %v1341, 1.1283791
  %v1343 = vmul.f32 %v1329, %v1342
  %v1344 = vmul.f32 %v1332, 3.8918573e-05
  %v1345 = vadd.f32 %v1344, 0.001143296
  %v1346 = vmul.f32 %v1332, %v1345
  %v1347 = vadd.f32 %v1346, 0.014752088
  %v1348 = vmul.f32 %v1332, %v1347
  %v1349 = vadd.f32 %v1348, 0.112945676
  %v1350 = vmul.f32 %v1332, %v1349
  %v1351 = vadd.f32 %v1350, 0.4994258
  %v1352 = vmul.f32 %v1332, %v1351
  %v1353 = vadd.f32 %v1352, 1.0
  %v1354 = vrcp.pop %v1353
  %v1355 = vmul.f32 %v1353, %v1354
  %v1356 = vsub.f32 1.0, %v1355
  %v1357 = vmul.f32 %v1354, %v1356
  %v1358 = vadd.f32 %v1354, %v1357
  %vm1359 = vweird.f32 %v1353
  %vm1360 = vweird.f32 %v1354
  %vm1361 = vmor %vm1359, %vm1360
  %v1362 = vsel %vm1361, %v1354, %v1358
  %v1363 = vand.u32 2147483647, %v1353
  %vm1364 = vcmp.eq.f32.partialorder %v1363, 8.507059e+37
  %v1365 = vand.u32 %v1353, 2147483648
  %v1366 = vor.u32 1.1754944e-38, %v1365
  %v1367 = vsel %vm1364, %v1366, %v1362
  %v1368 = vmul.f32 %v1343, %v1367
  %v1369 = vmin.f32 %v1368, 1.0
  %v1370 = vmax.f32 %v1369, -1.0
  %v1371 = vmul.f32 %v1330, %v1330
  %v1372 = vmin.f32 16.0, %v1371
  %v1373 = vmul.f32 %v1372, 2.1237322e-06
  %v1374 = vadd.f32 %v1373, 0.00028619796
  %v1375 = vmul.f32 %v1372, %v1374
  %v1376 = vadd.f32 %v1375, 0.0036580483
  %v1377 = vmul.f32 %v1372, %v1376
  %v1378 = vadd.f32 %v1377, 0.05243302
  %v1379 = vmul.f32 %v1372, %v1378
  %v1380 = vadd.f32 %v1379, 0.18741608
  %v1381 = vmul.f32 %v1372, %v1380
  %v1382 = vadd.f32 %v1381, 1.1283791
  %v1383 = vmul.f32 %v1330, %v1382
  %v1384 = vmul.f32 %v1372, 3.8918573e-05
  %v1385 = vadd.f32 %v1384, 0.001143296
  %v1386 = vmul.f32 %v1372, %v1385
  %v1387 = vadd.f32 %v1386, 0.014752088
  %v1388 = vmul.f32 %v1372, %v1387
  %v1389 = vadd.f32 %v1388, 0.112945676
  %v1390 = vmul.f32 %v1372, %v1389
  %v1391 = vadd.f32 %v1390, 0.4994258
  %v1392 = vmul.f32 %v1372, %v1391
  %v1393 = vadd.f32 %v1392, 1.0
  %v1394 = vrcp.pop %v1393
  %v1395 = vmul.f32 %v1393, %v1394
  %v1396 = vsub.f32 1.0, %v1395
  %v1397 = vmul.f32 %v1394, %v1396
  %v1398 = vadd.f32 %v1394, %v1397
  %vm1399 = vweird.f32 %v1393
  %vm1400 = vweird.f32 %v1394
  %vm1401 = vmor %vm1399, %vm1400
  %v1402 = vsel %vm1401, %v1394, %v1398
  %v1403 = vand.u32 2147483647, %v1393
  %vm1404 = vcmp.eq.f32.partialorder %v1403, 8.507059e+37
  %v1405 = vand.u32 %v1393, 2147483648
  %v1406 = vor.u32 1.1754944e-38, %v1405
  %v1407 = vsel %vm1404, %v1406, %v1402
  %v1408 = vmul.f32 %v1383, %v1407
  %v1409 = vmin.f32 %v1408, 1.0
  %v1410 = vmax.f32 %v1409, -1.0
  %v1411 = vadd.f32 %v1370, 1.0
  %v1412 = vadd.f32 %v1410, 1.0
  %v1413 = vmul.f32 %v1327, %v1411
  %v1414 = vmul.f32 %v1328, %v1412
  %v1415 = vld [vmem:[%s47] sm:$0xff]
  %v1416 = vld [vmem:[%s47 + $0x8] sm:$0xff]
  %v1417 = vld [vmem:[%s47 + $0x10] sm:$0xff]
  %v1418 = vld [vmem:[%s47 + $0x18] sm:$0xff]
  %v1419 = vld [vmem:[%s49] sm:$0x1]
  %v1421 = vperm.slane %v1419, 0
  %v1424 = vsel %vm430, %v1413, 0
  %v1427 = vsel %vm430, %v1414, 0
  %1429 = vmatpush.msra.mxu0 0.0
  %1430 = vmatpush.msra.mxu0 0.0
  %1431 = vmatpush.msra.mxu0 0.0
  %1432 = vmatpush.msra.mxu0 0.0
  %1433 = vmatpush.msra.mxu0 0.0
  %1434 = vmatpush.msra.mxu0 0.0
  %1435 = vmatpush.msra.mxu0 0.0
  %1436 = vmatpush.msra.mxu0 0.0
  %1437 = vmatpush.msra.mxu0 0.0
  %1438 = vmatpush.msra.mxu0 0.0
  %1439 = vmatpush.msra.mxu0 0.0
  %1440 = vmatpush.msra.mxu0 0.0
  %1441 = vmatpush.msra.mxu0 %v1418
  %1442 = vmatpush.msra.mxu0 %v1417
  %1443 = vmatpush.msra.mxu0 %v1416
  %1444 = vmatpush.msra.mxu0 %v1415
  %1445 = vmatmul.f32.gmra.mxu0 %v1424
  %v1446 = vpop.f32.mrf.mxu0
  %v1447 = vadd.f32 %v1421, %v1446
  %1448 = vmatmul.f32.gmra.mxu0 %v1427
  %v1449 = vpop.f32.mrf.mxu0
  %v1450 = vadd.f32 %v1421, %v1449
  %1451 = vdwg.mxu0
  %vm1452 = vcmask 39936
  %v1453 = vsel %vm1452, %v1447, -inf
  %1454 = vmax.xlane.f32.xlu0 %v1453
  %v1455 = vpop.xlane.xlu0 %1454
  %v1456 = vsel %vm1452, %v1450, -inf
  %1457 = vmax.xlane.f32.xlu0 %v1456
  %v1458 = vpop.xlane.xlu0 %1457
  %v1459 = vsub.f32 %v1447, %v1455
  %v1460 = vsub.f32 %v1450, %v1458
  %v1461 = vmul.f32 %v1459, 1.442695
  %v1462 = vpow.pop %v1461
  %v1463 = vmul.f32 %v1460, 1.442695
  %v1464 = vpow.pop %v1463
  %v1465 = vsel %vm1452, %v1462, 0.0
  %1466 = vadd.xlane.f32.xlu0 %v1465
  %v1467 = vpop.xlane.xlu0 %1466
  %v1468 = vsel %vm1452, %v1464, 0.0
  %1469 = vadd.xlane.f32.xlu0 %v1468
  %v1470 = vpop.xlane.xlu0 %1469
  %v1471 = vrcp.pop %v1467
  %v1472 = vrcp.pop %v1470
  %v1473 = vmul.f32 %v1462, %v1471
  %v1474 = vmul.f32 %v1464, %v1472
  %1475 = vst.msk [vmem:[%s63] sm:$0xff] %vm1452, %v1473
  %1476 = vst.msk [vmem:[%s63 + $0x8] sm:$0xff] %vm1452, %v1474
  %v1477 = vmul.f32 %v1447, 0.5
  %v1478 = vmul.f32 %v1450, 0.5
  %v1479 = vtanh.pop %v1477
  %v1480 = vtanh.pop %v1478
  %v1481 = vadd.f32 %v1479, 1.0
  %v1482 = vadd.f32 %v1480, 1.0
  %v1483 = vmul.f32 %v1481, 0.5
  %v1484 = vmul.f32 %v1482, 0.5
  %1487 = vrot.lane.b32.xlu0 %v1483, 123
  %v1488 = vpop.permute.xlu0 %1487
  %1489 = vrot.lane.b32.xlu0 %v1484, 123
  %v1490 = vpop.permute.xlu0 %1489
  %vm1493 = vcmask 7168
  %1494 = vst.msk [vmem:[%s65] sm:$0xff] %vm1493, %v1488
  %1495 = vst.msk [vmem:[%s65 + $0x8] sm:$0xff] %vm1493, %v1490
  %v1496 = vlaneseq
  %v1497 = vand.u32 %v1496, 127
  %v1498 = vld [vmem:[%s7] sm:$0xff]
  %v1499 = vld [vmem:[%s7 + $0x8] sm:$0xf]
  %1500 = vset.pattern.permute.xlu0 0
  %1501 = vperm.xlu0 %1500, %v1498
  %v1502 = vpop.permute.xlu0 %1501
  %1503 = vset.pattern.permute.xlu0 0
  %1504 = vperm.xlu0 %1503, %v1499
  %v1505 = vpop.permute.xlu0 %1504
  %vm1506 = vcmp.eq.s32.totalorder %v1497, %v1502
  %vm1507 = vcmp.eq.s32.totalorder %v1497, %v1505
  %v1508 = vsel %vm1506, 1, 0
  %v1509 = vsel %vm1507, 1, 0
  %v1510 = vcvt.s32.f32 %v1508
  %v1511 = vcvt.s32.f32 %v1509
  %v1512 = vld [vmem:[%s9] sm:$0xff]
  %v1513 = vld [vmem:[%s9 + $0x8] sm:$0xf]
  %1514 = vset.pattern.permute.xlu0 0
  %1515 = vperm.xlu0 %1514, %v1512
  %v1516 = vpop.permute.xlu0 %1515
  %1517 = vset.pattern.permute.xlu0 0
  %1518 = vperm.xlu0 %1517, %v1513
  %v1519 = vpop.permute.xlu0 %1518
  %vm1520 = vcmp.eq.s32.totalorder %v1497, %v1516
  %vm1521 = vcmp.eq.s32.totalorder %v1497, %v1519
  %v1522 = vsel %vm1520, 1, 0
  %v1523 = vsel %vm1521, 1, 0
  %v1524 = vcvt.s32.f32 %v1522
  %v1525 = vcvt.s32.f32 %v1523
  %v1527 = vsel %vm328, %v1510, 0
  %v1530 = vsel %vm328, %v1511, 0
  %1532 = vmatpush.msra.mxu0 0.0
  %1533 = vmatpush.msra.mxu0 0.0
  %1534 = vmatpush.msra.mxu0 0.0
  %1535 = vmatpush.msra.mxu0 0.0
  %1536 = vmatpush.msra.mxu0 0.0
  %1537 = vmatpush.msra.mxu0 0.0
  %1538 = vmatpush.msra.mxu0 0.0
  %1539 = vmatpush.msra.mxu0 0.0
  %1540 = vmatpush.msra.mxu0 0.0
  %1541 = vmatpush.msra.mxu0 0.0
  %1542 = vmatpush.msra.mxu0 0.0
  %1543 = vmatpush.msra.mxu0 0.0
  %1544 = vmatpush.msra.mxu0 0.0
  %1545 = vmatpush.msra.mxu0 0.0
  %1546 = vmatpush.msra.mxu0 %v1077
  %1547 = vmatpush.msra.mxu0 %v1074
  %1548 = vmatmul.f32.gmra.mxu0 %v1527
  %v1549 = vpop.f32.mrf.mxu0
  %v1550 = vadd.f32 0.0, %v1549
  %1551 = vmatmul.f32.gmra.mxu0 %v1530
  %v1552 = vpop.f32.mrf.mxu0
  %v1553 = vadd.f32 0.0, %v1552
  %1554 = vdwg.mxu0
  %v1556 = vsel %vm328, %v1524, 0
  %v1559 = vsel %vm328, %v1525, 0
  %1561 = vmatpush.msra.mxu0 0.0
  %1562 = vmatpush.msra.mxu0 0.0
  %1563 = vmatpush.msra.mxu0 0.0
  %1564 = vmatpush.msra.mxu0 0.0
  %1565 = vmatpush.msra.mxu0 0.0
  %1566 = vmatpush.msra.mxu0 0.0
  %1567 = vmatpush.msra.mxu0 0.0
  %1568 = vmatpush.msra.mxu0 0.0
  %1569 = vmatpush.msra.mxu0 0.0
  %1570 = vmatpush.msra.mxu0 0.0
  %1571 = vmatpush.msra.mxu0 0.0
  %1572 = vmatpush.msra.mxu0 0.0
  %1573 = vmatpush.msra.mxu0 0.0
  %1574 = vmatpush.msra.mxu0 0.0
  %1575 = vmatpush.msra.mxu0 %v1077
  %1576 = vmatpush.msra.mxu0 %v1074
  %1577 = vmatmul.f32.gmra.mxu0 %v1556
  %v1578 = vpop.f32.mrf.mxu0
  %v1579 = vadd.f32 0.0, %v1578
  %1580 = vmatmul.f32.gmra.mxu0 %v1559
  %v1581 = vpop.f32.mrf.mxu0
  %v1582 = vadd.f32 0.0, %v1581
  %1583 = vdwg.mxu0
  %1584 = vmatpush.msra.mxu0 0.0
  %1585 = vmatpush.msra.mxu0 0.0
  %1586 = vmatpush.msra.mxu0 0.0
  %1587 = vmatpush.msra.mxu0 0.0
  %1588 = vmatpush.msra.mxu0 0.0
  %1589 = vmatpush.msra.mxu0 0.0
  %1590 = vmatpush.msra.mxu0 0.0
  %1591 = vmatpush.msra.mxu0 0.0
  %1592 = vmatpush.msra.mxu0 0.0
  %1593 = vmatpush.msra.mxu0 0.0
  %1594 = vmatpush.msra.mxu0 0.0
  %1595 = vmatpush.msra.mxu0 0.0
  %1596 = vmatpush.msra.mxu0 0.0
  %1597 = vmatpush.msra.mxu0 0.0
  %1598 = vmatpush.msra.mxu0 %v140
  %1599 = vmatpush.msra.mxu0 %v139
  %1600 = vmatmul.f32.gmra.mxu0 %v1527
  %v1601 = vpop.f32.mrf.mxu0
  %v1602 = vadd.f32 0.0, %v1601
  %1603 = vmatmul.f32.gmra.mxu0 %v1530
  %v1604 = vpop.f32.mrf.mxu0
  %v1605 = vadd.f32 0.0, %v1604
  %1606 = vdwg.mxu0
  %1607 = vmatpush.msra.mxu0 0.0
  %1608 = vmatpush.msra.mxu0 0.0
  %1609 = vmatpush.msra.mxu0 0.0
  %1610 = vmatpush.msra.mxu0 0.0
  %1611 = vmatpush.msra.mxu0 0.0
  %1612 = vmatpush.msra.mxu0 0.0
  %1613 = vmatpush.msra.mxu0 0.0
  %1614 = vmatpush.msra.mxu0 0.0
  %1615 = vmatpush.msra.mxu0 0.0
  %1616 = vmatpush.msra.mxu0 0.0
  %1617 = vmatpush.msra.mxu0 0.0
  %1618 = vmatpush.msra.mxu0 0.0
  %1619 = vmatpush.msra.mxu0 0.0
  %1620 = vmatpush.msra.mxu0 0.0
  %1621 = vmatpush.msra.mxu0 %v140
  %1622 = vmatpush.msra.mxu0 %v139
  %1623 = vmatmul.f32.gmra.mxu0 %v1556
  %v1624 = vpop.f32.mrf.mxu0
  %v1625 = vadd.f32 0.0, %v1624
  %1626 = vmatmul.f32.gmra.mxu0 %v1559
  %v1627 = vpop.f32.mrf.mxu0
  %v1628 = vadd.f32 0.0, %v1627
  %1629 = vdwg.mxu0
  %v1630 = vld [vmem:[%s5] sm:$0xff]
  %v1631 = vld [vmem:[%s5 + $0x8] sm:$0xf]
  %1634 = vrot.lane.b32.xlu0 %v1579, 16
  %v1635 = vpop.permute.xlu0 %1634
  %1636 = vrot.lane.b32.xlu0 %v1582, 16
  %v1637 = vpop.permute.xlu0 %1636
  %1642 = vrot.lane.b32.xlu0 %v1602, 32
  %v1643 = vpop.permute.xlu0 %1642
  %1644 = vrot.lane.b32.xlu0 %v1605, 32
  %v1645 = vpop.permute.xlu0 %1644
  %1650 = vrot.lane.b32.xlu0 %v1625, 40
  %v1651 = vpop.permute.xlu0 %1650
  %1652 = vrot.lane.b32.xlu0 %v1628, 40
  %v1653 = vpop.permute.xlu0 %1652
  %1658 = vrot.lane.b32.xlu0 %v1630, 48
  %v1659 = vpop.permute.xlu0 %1658
  %1660 = vrot.lane.b32.xlu0 %v1631, 48
  %v1661 = vpop.permute.xlu0 %1660
  %v1664 = vsel %vm328, %v1550, %v1635
  %v1665 = vsel %vm328, %v1553, %v1637
  %v1666 = vsel %vm430, %v1664, %v1643
  %v1667 = vsel %vm430, %v1665, %v1645
  %vm1668 = vcmask 326656
  %v1669 = vsel %vm1668, %v1666, %v1651
  %v1670 = vsel %vm1668, %v1667, %v1653
  %v1671 = vsel %vm433, %v1669, %v1659
  %v1672 = vsel %vm433, %v1670, %v1661
  %v1673 = vld [vmem:[%s51] sm:$0x1]
  %v1674 = vld [vmem:[%s53] sm:$0x1]
  %vm1675 = vcmask 424960
  %v1676 = vsel %vm1675, %v1671, 0.0
  %vm1677 = vcmask 420864
  %v1678 = vsel %vm1677, %v1672, 0.0
  %v1679 = vadd.f32 %v1676, %v1678
  %v1680 = vrot.slane %v1679, 4
  %v1681 = vadd.f32 %v1679, %v1680
  %v1682 = vrot.slane %v1681, 2
  %v1683 = vadd.f32 %v1681, %v1682
  %v1684 = vrot.slane %v1683, 1
  %v1685 = vadd.f32 %v1683, %v1684
  %v1686 = vrcp.pop 12.0
  %v1687 = vmul.f32 12.0, %v1686
  %v1688 = vsub.f32 1.0, %v1687
  %v1689 = vmul.f32 %v1686, %v1688
  %v1690 = vadd.f32 %v1686, %v1689
  %vm1691 = vweird.f32 %v1686
  %v1692 = vsel %vm1691, %v1686, %v1690
  %v1693 = vmul.f32 %v1685, %v1692
  %v1694 = vsub.f32 %v1671, %v1693
  %v1695 = vsub.f32 %v1672, %v1693
  %v1696 = vmul.f32 %v1694, %v1694
  %v1697 = vmul.f32 %v1695, %v1695
  %v1698 = vsel %vm1675, %v1696, 0.0
  %v1699 = vsel %vm1677, %v1697, 0.0
  %v1700 = vadd.f32 %v1698, %v1699
  %v1701 = vrot.slane %v1700, 4
  %v1702 = vadd.f32 %v1700, %v1701
  %v1703 = vrot.slane %v1702, 2
  %v1704 = vadd.f32 %v1702, %v1703
  %v1705 = vrot.slane %v1704, 1
  %v1706 = vadd.f32 %v1704, %v1705
  %v1707 = vmul.f32 %v1706, %v1692
  %v1708 = vadd.f32 %v1707, 1e-05
  %v1709 = vrsqrt.pop %v1708
  %v1710 = vmul.f32 %v1709, %v1708
  %v1711 = vmul.f32 %v1710, %v1709
  %v1712 = vmul.f32 0.5, %v1711
  %v1713 = vsub.f32 1.5, %v1712
  %v1714 = vmul.f32 %v1709, %v1713
  %vm1715 = vweird.f32 %v1708
  %vm1716 = vweird.f32 %v1709
  %vm1717 = vmor %vm1715, %vm1716
  %v1718 = vsel %vm1717, %v1709, %v1714
  %v1719 = vmul.f32 %v1694, %v1718
  %v1720 = vmul.f32 %v1695, %v1718
  %v1722 = vperm.slane %v1673, 0
  %v1724 = vmul.f32 %v1719, %v1722
  %v1725 = vmul.f32 %v1720, %v1722
  %v1727 = vperm.slane %v1674, 0
  %v1729 = vadd.f32 %v1724, %v1727
  %v1730 = vadd.f32 %v1725, %v1727
  %v1731 = vld [vmem:[%s55] sm:$0xff]
  %v1732 = vld [vmem:[%s55 + $0x8] sm:$0xff]
  %v1733 = vld [vmem:[%s55 + $0x10] sm:$0xff]
  %v1734 = vld [vmem:[%s55 + $0x18] sm:$0xff]
  %v1735 = vld [vmem:[%s55 + $0x20] sm:$0xff]
  %v1736 = vld [vmem:[%s55 + $0x28] sm:$0xff]
  %v1737 = vld [vmem:[%s55 + $0x30] sm:$0xf]
  %v1738 = vld [vmem:[%s57] sm:$0x1]
  %v1740 = vperm.slane %v1738, 0
  %v1743 = vsel %vm1675, %v1729, 0
  %v1746 = vsel %vm1675, %v1730, 0
  %vm1748 = vcmask 1043456
  %v1750 = vsel %vm1748, %v1737, 0
  %1752 = vmatpush.msra.mxu0 0.0
  %1753 = vmatpush.msra.mxu0 0.0
  %1754 = vmatpush.msra.mxu0 0.0
  %1755 = vmatpush.msra.mxu0 0.0
  %1756 = vmatpush.msra.mxu0 0.0
  %1757 = vmatpush.msra.mxu0 0.0
  %1758 = vmatpush.msra.mxu0 0.0
  %1759 = vmatpush.msra.mxu0 0.0
  %1760 = vmatpush.msra.mxu0 0.0
  %1761 = vmatpush.msra.mxu0 %v1750
  %1762 = vmatpush.msra.mxu0 %v1736
  %1763 = vmatpush.msra.mxu0 %v1735
  %1764 = vmatpush.msra.mxu0 %v1734
  %1765 = vmatpush.msra.mxu0 %v1733
  %1766 = vmatpush.msra.mxu0 %v1732
  %1767 = vmatpush.msra.mxu0 %v1731
  %1768 = vmatmul.f32.gmra.mxu0 %v1743
  %v1769 = vpop.f32.mrf.mxu0
  %v1770 = vadd.f32 %v1740, %v1769
  %1771 = vmatmul.f32.gmra.mxu0 %v1746
  %v1772 = vpop.f32.mrf.mxu0
  %v1773 = vadd.f32 %v1740, %v1772
  %1774 = vdwg.mxu0
  %v1775 = vmul.f32 %v1770, 0.5
  %v1776 = vmul.f32 %v1773, 0.5
  %v1777 = vmul.f32 %v1770, 0.70710677
  %v1778 = vmul.f32 %v1773, 0.70710677
  %v1779 = vmul.f32 %v1777, %v1777
  %v1780 = vmin.f32 16.0, %v1779
  %v1781 = vmul.f32 %v1780, 2.1237322e-06
  %v1782 = vadd.f32 %v1781, 0.00028619796
  %v1783 = vmul.f32 %v1780, %v1782
  %v1784 = vadd.f32 %v1783, 0.0036580483
  %v1785 = vmul.f32 %v1780, %v1784
  %v1786 = vadd.f32 %v1785, 0.05243302
  %v1787 = vmul.f32 %v1780, %v1786
  %v1788 = vadd.f32 %v1787, 0.18741608
  %v1789 = vmul.f32 %v1780, %v1788
  %v1790 = vadd.f32 %v1789, 1.1283791
  %v1791 = vmul.f32 %v1777, %v1790
  %v1792 = vmul.f32 %v1780, 3.8918573e-05
  %v1793 = vadd.f32 %v1792, 0.001143296
  %v1794 = vmul.f32 %v1780, %v1793
  %v1795 = vadd.f32 %v1794, 0.014752088
  %v1796 = vmul.f32 %v1780, %v1795
  %v1797 = vadd.f32 %v1796, 0.112945676
  %v1798 = vmul.f32 %v1780, %v1797
  %v1799 = vadd.f32 %v1798, 0.4994258
  %v1800 = vmul.f32 %v1780, %v1799
  %v1801 = vadd.f32 %v1800, 1.0
  %v1802 = vrcp.pop %v1801
  %v1803 = vmul.f32 %v1801, %v1802
  %v1804 = vsub.f32 1.0, %v1803
  %v1805 = vmul.f32 %v1802, %v1804
  %v1806 = vadd.f32 %v1802, %v1805
  %vm1807 = vweird.f32 %v1801
  %vm1808 = vweird.f32 %v1802
  %vm1809 = vmor %vm1807, %vm1808
  %v1810 = vsel %vm1809, %v1802, %v1806
  %v1811 = vand.u32 2147483647, %v1801
  %vm1812 = vcmp.eq.f32.partialorder %v1811, 8.507059e+37
  %v1813 = vand.u32 %v1801, 2147483648
  %v1814 = vor.u32 1.1754944e-38, %v1813
  %v1815 = vsel %vm1812, %v1814, %v1810
  %v1816 = vmul.f32 %v1791, %v1815
  %v1817 = vmin.f32 %v1816, 1.0
  %v1818 = vmax.f32 %v1817, -1.0
  %v1819 = vmul.f32 %v1778, %v1778
  %v1820 = vmin.f32 16.0, %v1819
  %v1821 = vmul.f32 %v1820, 2.1237322e-06
  %v1822 = vadd.f32 %v1821, 0.00028619796
  %v1823 = vmul.f32 %v1820, %v1822
  %v1824 = vadd.f32 %v1823, 0.0036580483
  %v1825 = vmul.f32 %v1820, %v1824
  %v1826 = vadd.f32 %v1825, 0.05243302
  %v1827 = vmul.f32 %v1820, %v1826
  %v1828 = vadd.f32 %v1827, 0.18741608
  %v1829 = vmul.f32 %v1820, %v1828
  %v1830 = vadd.f32 %v1829, 1.1283791
  %v1831 = vmul.f32 %v1778, %v1830
  %v1832 = vmul.f32 %v1820, 3.8918573e-05
  %v1833 = vadd.f32 %v1832, 0.001143296
  %v1834 = vmul.f32 %v1820, %v1833
  %v1835 = vadd.f32 %v1834, 0.014752088
  %v1836 = vmul.f32 %v1820, %v1835
  %v1837 = vadd.f32 %v1836, 0.112945676
  %v1838 = vmul.f32 %v1820, %v1837
  %v1839 = vadd.f32 %v1838, 0.4994258
  %v1840 = vmul.f32 %v1820, %v1839
  %v1841 = vadd.f32 %v1840, 1.0
  %v1842 = vrcp.pop %v1841
  %v1843 = vmul.f32 %v1841, %v1842
  %v1844 = vsub.f32 1.0, %v1843
  %v1845 = vmul.f32 %v1842, %v1844
  %v1846 = vadd.f32 %v1842, %v1845
  %vm1847 = vweird.f32 %v1841
  %vm1848 = vweird.f32 %v1842
  %vm1849 = vmor %vm1847, %vm1848
  %v1850 = vsel %vm1849, %v1842, %v1846
  %v1851 = vand.u32 2147483647, %v1841
  %vm1852 = vcmp.eq.f32.partialorder %v1851, 8.507059e+37
  %v1853 = vand.u32 %v1841, 2147483648
  %v1854 = vor.u32 1.1754944e-38, %v1853
  %v1855 = vsel %vm1852, %v1854, %v1850
  %v1856 = vmul.f32 %v1831, %v1855
  %v1857 = vmin.f32 %v1856, 1.0
  %v1858 = vmax.f32 %v1857, -1.0
  %v1859 = vadd.f32 %v1818, 1.0
  %v1860 = vadd.f32 %v1858, 1.0
  %v1861 = vmul.f32 %v1775, %v1859
  %v1862 = vmul.f32 %v1776, %v1860
  %v1863 = vld [vmem:[%s59] sm:$0xff]
  %v1864 = vld [vmem:[%s59 + $0x8] sm:$0xff]
  %v1865 = vld [vmem:[%s59 + $0x10] sm:$0xff]
  %v1866 = vld [vmem:[%s59 + $0x18] sm:$0xff]
  %v1867 = vld [vmem:[#allocation2] sm:$0x1]
  %v1869 = vperm.slane %v1867, 0
  %v1872 = vsel %vm430, %v1861, 0
  %v1875 = vsel %vm430, %v1862, 0
  %1877 = vmatpush.msra.mxu0 0.0
  %1878 = vmatpush.msra.mxu0 0.0
  %1879 = vmatpush.msra.mxu0 0.0
  %1880 = vmatpush.msra.mxu0 0.0
  %1881 = vmatpush.msra.mxu0 0.0
  %1882 = vmatpush.msra.mxu0 0.0
  %1883 = vmatpush.msra.mxu0 0.0
  %1884 = vmatpush.msra.mxu0 0.0
  %1885 = vmatpush.msra.mxu0 0.0
  %1886 = vmatpush.msra.mxu0 0.0
  %1887 = vmatpush.msra.mxu0 0.0
  %1888 = vmatpush.msra.mxu0 0.0
  %1889 = vmatpush.msra.mxu0 %v1866
  %1890 = vmatpush.msra.mxu0 %v1865
  %1891 = vmatpush.msra.mxu0 %v1864
  %1892 = vmatpush.msra.mxu0 %v1863
  %1893 = vmatmul.f32.gmra.mxu0 %v1872
  %v1894 = vpop.f32.mrf.mxu0
  %v1895 = vadd.f32 %v1869, %v1894
  %1896 = vmatmul.f32.gmra.mxu0 %v1875
  %v1897 = vpop.f32.mrf.mxu0
  %v1898 = vadd.f32 %v1869, %v1897
  %1899 = vdwg.mxu0
  %v1900 = vmul.f32 %v1895, 0.5
  %v1901 = vmul.f32 %v1898, 0.5
  %v1902 = vtanh.pop %v1900
  %v1903 = vtanh.pop %v1901
  %v1904 = vadd.f32 %v1902, 1.0
  %v1905 = vadd.f32 %v1903, 1.0
  %v1906 = vmul.f32 %v1904, 0.5
  %v1907 = vmul.f32 %v1905, 0.5
  %1908 = vst.msk [vmem:[%s67] sm:$0xff] %vm1493, %v1906
  %vm1909 = vcmask 3072
  %1910 = vst.msk [vmem:[%s67 + $0x8] sm:$0xf] %vm1909, %v1907
  // Predicated region
  $region126: #{torch_model_forward.1} parent=0 // pred_check
    _
  $region127: #{torch_model_forward.1} parent=0 // pred_check_branch
    %1912 = sbr.rel (0) target = $region129
  $region128: #{torch_model_forward.1} parent=0 // pred_region
    _
  $region129: #{torch_model_forward.1} parent=0 // pred_fallthru
    _
  // Predicated region
  $region130: #{torch_model_forward.1} parent=0 // pred_check
    _
  $region131: #{torch_model_forward.1} parent=0 // pred_check_branch
    %1914 = sbr.rel (0) target = $region133
  $region132: #{torch_model_forward.1} parent=0 // pred_region
    _
  $region133: #{torch_model_forward.1} parent=0 // pred_fallthru
    _
  // Predicated region
  $region134: #{torch_model_forward.1} parent=0 // pred_check
    _
  $region135: #{torch_model_forward.1} parent=0 // pred_check_branch
    %1916 = sbr.rel (0) target = $region137
  $region136: #{torch_model_forward.1} parent=0 // pred_region
    _
  $region137: #{torch_model_forward.1} parent=0 // pred_fallthru
    _
  // Predicated region
  $region138: #{torch_model_forward.1} parent=0 // pred_check
    _
  $region139: #{torch_model_forward.1} parent=0 // pred_check_branch
    %1918 = sbr.rel (0) target = $region141
  $region140: #{torch_model_forward.1} parent=0 // pred_region
    _
  $region141: #{torch_model_forward.1} parent=0 // pred_fallthru
    _
  // Predicated region
  $region142: #{torch_model_forward.1} parent=0 // pred_check
    _
  $region143: #{torch_model_forward.1} parent=0 // pred_check_branch
    %1920 = sbr.rel (0) target = $region145
  $region144: #{torch_model_forward.1} parent=0 // pred_region
    _
  $region145: #{torch_model_forward.1} parent=0 // pred_fallthru
    _
  // Predicated region
  $region146: #{torch_model_forward.1} parent=0 // pred_check
    _
  $region147: #{torch_model_forward.1} parent=0 // pred_check_branch
    %1922 = sbr.rel (0) target = $region149
  $region148: #{torch_model_forward.1} parent=0 // pred_region
    _
  $region149: #{torch_model_forward.1} parent=0 // pred_fallthru
    _

</llo_original>
